<compile_context>
chip_gen: v6e
topology: v6e:2x2x1
jax: 0.10.0
libtpu: 0.0.40
codegen_flags: <defaults>
</compile_context>

<pallas_src>
import functools

import jax
import jax.numpy as jnp
from jax.experimental import pallas as pl
from jax.experimental.pallas import tpu as pltpu

_EPS = 1e-5


def _round_up(x, m):
    return ((x + m - 1) // m) * m


def _make_denseblock_kernel(N, H, W, C0p, Gp, num_layers):
    """Builds the fused dense-block kernel for a fixed static configuration."""
    NHW = N * H * W

    def kernel(x_ref, masks_ref, *rest):
        o_ref = rest[-1]
        param_refs = rest[:-1]

        # Running concatenated feature map, channel-major (channels, N*H*W).
        # Stays a VMEM-resident value for the whole block.
        feat = x_ref[...]

        for layer in range(num_layers):
            gamma = param_refs[3 * layer][...]       # (Cp, 1)  f32
            beta = param_refs[3 * layer + 1][...]    # (Cp, 1)  f32
            w = param_refs[3 * layer + 2][...]       # (Gp, 9*Cp) bf16

            # --- BatchNorm2d (training-mode batch stats, biased variance),
            #     one-pass E[x^2] - E[x]^2, lane-dense over 512 lanes ---------
            mean = jnp.mean(feat, axis=1, keepdims=True)
            var = jnp.mean(feat * feat, axis=1, keepdims=True) - mean * mean
            scale = gamma * jax.lax.rsqrt(var + _EPS)
            shift = beta - mean * scale
            # --- ReLU --------------------------------------------------------
            y = jnp.maximum(feat * scale + shift, 0.0)          # (Cp, NHW)

            # --- im2col: 9 spatially shifted copies via XLU lane rotations
            #     + precomputed boundary masks (zero padding) ------------------
            taps = []
            for dy in range(3):
                for dx in range(3):
                    s = (dy - 1) * W + (dx - 1)      # flat source offset
                    if s == 0:
                        taps.append(y)
                        continue
                    # tap[c, p] = y[c, p + s]   (jnp.roll semantics)
                    tap = pltpu.roll(y, shift=(-s) % NHW, axis=1)
                    tap = tap * masks_ref[dy * 3 + dx]  # zero out-of-image taps
                    taps.append(tap)
            # (9*Cp, NHW); segments are multiples of 8 rows -> aligned concat.
            patches = jnp.concatenate(taps, axis=0).astype(jnp.bfloat16)

            # --- 3x3 conv as ONE MXU matmul, K = 9*Cp, f32 accumulation ------
            out = jnp.dot(w, patches, preferred_element_type=jnp.float32)

            # --- dense concatenation (torch.cat) stays in VMEM ---------------
            feat = jnp.concatenate([feat, out], axis=0)

        o_ref[...] = feat                 # (Cout_p, NHW): lane-dense, unmasked

    return kernel


def _conv_tap_masks(N, H, W):
    """(9, 1, N*H*W) f32 masks: 1.0 where the shifted tap stays in the image."""
    hh, ww = jnp.meshgrid(jnp.arange(H), jnp.arange(W), indexing="ij")
    masks = []
    for dy in range(3):
        for dx in range(3):
            m = ((hh + dy - 1 >= 0) & (hh + dy - 1 < H) &
                 (ww + dx - 1 >= 0) & (ww + dx - 1 < W))
            m = jnp.tile(m.astype(jnp.float32).reshape(-1), (N,))
            masks.append(m.reshape(1, N * H * W))
    return jnp.stack(masks, axis=0)


def _pack_params(params, C0, G, C0p, Gp):
    """Convert PyTorch-ordered per-layer (gamma, beta, w_hwio) into the kernel's
    padded, channel-major "storage order" layout.

    PyTorch channel order for layer i input:  [out_{i-1}, ..., out_0, x0]
    Kernel storage order (8-padded segments): [x0 |pad][out_0 |pad]...[out_{i-1}|pad]
    """
    packed = []
    for i, (gamma, beta, w) in enumerate(params):
        C_in = C0 + i * G
        Cp_in = C0p + i * Gp
        assert gamma.shape == (C_in,) and w.shape == (3, 3, C_in, G)

        # (pytorch_start, storage_start, length) for each channel segment.
        seg = [(i * G, 0, C0)]                               # x0
        for j in range(i):                                   # out_j
            seg.append(((i - 1 - j) * G, C0p + j * Gp, G))

        g_k = jnp.zeros((Cp_in, 1), jnp.float32)
        b_k = jnp.zeros((Cp_in, 1), jnp.float32)
        w_k = jnp.zeros((3, 3, Cp_in, Gp), jnp.float32)
        for pt, st, n in seg:
            g_k = g_k.at[st:st + n, 0].set(gamma[pt:pt + n])
            b_k = b_k.at[st:st + n, 0].set(beta[pt:pt + n])
            w_k = w_k.at[:, :, st:st + n, :G].set(w[:, :, pt:pt + n, :])
        # (3,3,Cp,Gp) -> (Gp,3,3,Cp) -> (Gp, 9*Cp); column = (dy*3+dx)*Cp + c,
        # matching the kernel's tap/channel ordering of the patch matrix.
        w_k = jnp.transpose(w_k, (3, 0, 1, 2)).reshape(Gp, 9 * Cp_in)
        packed.extend([g_k, b_k, w_k.astype(jnp.bfloat16)])
    return packed


def denseblock_forward(x_nchw, params):
    """Equivalent of denseblock.forward. Input/output are NCHW like PyTorch."""
    N, C0, H, W = x_nchw.shape
    L = len(params)
    G = params[0][2].shape[-1]
    C0p = _round_up(C0, 8)
    Gp = _round_up(G, 8)
    NHW = N * H * W          # 512 here -> multiple of 128 (lane-dense layout)
    Cout_p = C0p + L * Gp

    # NCHW -> channel-major flat (C0p, N*H*W); padded channels stay zero.
    x2d = jnp.transpose(x_nchw, (1, 0, 2, 3)).reshape(C0, NHW)
    x2d = jnp.pad(x2d, ((0, C0p - C0), (0, 0)))

    args = [x2d, _conv_tap_masks(N, H, W)] + _pack_params(params, C0, G, C0p, Gp)

    kernel = _make_denseblock_kernel(N, H, W, C0p, Gp, L)
    out2d = pl.pallas_call(
        kernel,
        out_shape=jax.ShapeDtypeStruct((Cout_p, NHW), jnp.float32),
        in_specs=[pl.BlockSpec(memory_space=pltpu.MemorySpace.VMEM)] * len(args),
        out_specs=pl.BlockSpec(memory_space=pltpu.MemorySpace.VMEM),
    )(*args)

    # Storage order [x0 | out_0 | ... | out_{L-1}] (padded) ->
    # PyTorch order [out_{L-1}, ..., out_0, x0], back to NCHW.
    out4 = out2d.reshape(Cout_p, N, H, W)
    segs = [out4[C0p + j * Gp: C0p + j * Gp + G] for j in range(L - 1, -1, -1)]
    segs.append(out4[:C0])
    y = jnp.concatenate(segs, axis=0)
    return jnp.transpose(y, (1, 0, 2, 3))


def init_params(key, in_channel, growth_rate, num_layers):
    """Deterministic synthetic parameters with the shapes denseblock.__init__ implies
    (PyTorch channel ordering; conv weights stored as HWIO)."""
    params = []
    channel = in_channel
    for _ in range(num_layers):
        key, k1, k2, k3 = jax.random.split(key, 4)
        gamma = 1.0 + 0.1 * jax.random.normal(k1, (channel,), jnp.float32)
        beta = 0.1 * jax.random.normal(k2, (channel,), jnp.float32)
        w = 0.1 * jax.random.normal(k3, (3, 3, channel, growth_rate), jnp.float32)
        params.append((gamma, beta, w))
        channel += growth_rate
    return params


def _ref_forward(x_nchw, params):
    """Pure-JAX reference (XLA conv).  Conv inputs are cast to bf16 to match the
    kernel's MXU precision; accumulation stays f32."""
    x = jnp.transpose(x_nchw, (0, 2, 3, 1))
    for gamma, beta, w in params:
        mean = jnp.mean(x, axis=(0, 1, 2))
        var = jnp.mean((x - mean) ** 2, axis=(0, 1, 2))
        y = (x - mean) * jax.lax.rsqrt(var + _EPS) * gamma + beta
        y = jnp.maximum(y, 0.0)
        out = jax.lax.conv_general_dilated(
            y.astype(jnp.bfloat16), w.astype(jnp.bfloat16),
            window_strides=(1, 1), padding="SAME",
            dimension_numbers=("NHWC", "HWIO", "NHWC"),
            preferred_element_type=jnp.float32)
        x = jnp.concatenate([out, x], axis=-1)
    return jnp.transpose(x, (0, 3, 1, 2))


if __name__ == "__main__":
    key = jax.random.PRNGKey(0)
    kx, kp = jax.random.split(key)

    N, C, H, W = 2, 4, 16, 16
    growth_rate, num_layers = 8, 3

    x = jax.random.normal(kx, (N, C, H, W), jnp.float32)
    params = init_params(kp, C, growth_rate, num_layers)

    y = denseblock_forward(x, params)
    jax.block_until_ready(y)

    expected_channels = C + growth_rate * num_layers
    assert y.shape == (N, expected_channels, H, W), y.shape

    # Sanity check against a precision-matched pure-JAX reference.
    y_ref = _ref_forward(x, params)
    max_err = float(jnp.max(jnp.abs(y - y_ref)))
    assert max_err < 1e-2, f"max abs error {max_err}"

    print("KERNEL_OK")
</pallas_src>

<mosaic_0001>
module attributes {stable_mosaic.version = 11 : i64} {
  func.func @kernel(%arg0: memref<8x512xf32, #tpu.memory_space<vmem>>, %arg1: memref<9x1x512xf32, #tpu.memory_space<vmem>>, %arg2: memref<8x1xf32, #tpu.memory_space<vmem>>, %arg3: memref<8x1xf32, #tpu.memory_space<vmem>>, %arg4: memref<8x72xbf16, #tpu.memory_space<vmem>>, %arg5: memref<16x1xf32, #tpu.memory_space<vmem>>, %arg6: memref<16x1xf32, #tpu.memory_space<vmem>>, %arg7: memref<8x144xbf16, #tpu.memory_space<vmem>>, %arg8: memref<24x1xf32, #tpu.memory_space<vmem>>, %arg9: memref<24x1xf32, #tpu.memory_space<vmem>>, %arg10: memref<8x216xbf16, #tpu.memory_space<vmem>>, %arg11: memref<32x512xf32, #tpu.memory_space<vmem>>) attributes {dimension_semantics = [], scalar_prefetch = 0 : i64, scratch_operands = 0 : i64, tpu.core_type = #tpu.core_type<tc>} {
    %c0 = arith.constant 0 : index
    %c0_0 = arith.constant 0 : index
    %0 = vector.load %arg0[%c0, %c0_0] : memref<8x512xf32, #tpu.memory_space<vmem>>, vector<8x512xf32>
    %c0_1 = arith.constant 0 : index
    %c0_2 = arith.constant 0 : index
    %1 = vector.load %arg2[%c0_1, %c0_2] : memref<8x1xf32, #tpu.memory_space<vmem>>, vector<8x1xf32>
    %c0_3 = arith.constant 0 : index
    %c0_4 = arith.constant 0 : index
    %2 = vector.load %arg3[%c0_3, %c0_4] : memref<8x1xf32, #tpu.memory_space<vmem>>, vector<8x1xf32>
    %c0_5 = arith.constant 0 : index
    %c0_6 = arith.constant 0 : index
    %3 = vector.load %arg4[%c0_5, %c0_6] : memref<8x72xbf16, #tpu.memory_space<vmem>>, vector<8x72xbf16>
    %cst = arith.constant dense<0.000000e+00> : vector<8xf32>
    %4 = vector.multi_reduction <add>, %0, %cst [1] : vector<8x512xf32> to vector<8xf32>
    %5 = vector.shape_cast %4 : vector<8xf32> to vector<8x1xf32>
    %cst_7 = arith.constant 5.120000e+02 : f32
    %6 = vector.broadcast %cst_7 : f32 to vector<8x1xf32>
    %7 = arith.divf %5, %6 : vector<8x1xf32>
    %8 = arith.mulf %0, %0 : vector<8x512xf32>
    %cst_8 = arith.constant dense<0.000000e+00> : vector<8xf32>
    %9 = vector.multi_reduction <add>, %8, %cst_8 [1] : vector<8x512xf32> to vector<8xf32>
    %10 = vector.shape_cast %9 : vector<8xf32> to vector<8x1xf32>
    %cst_9 = arith.constant 5.120000e+02 : f32
    %11 = vector.broadcast %cst_9 : f32 to vector<8x1xf32>
    %12 = arith.divf %10, %11 : vector<8x1xf32>
    %13 = arith.mulf %7, %7 : vector<8x1xf32>
    %14 = arith.subf %12, %13 : vector<8x1xf32>
    %cst_10 = arith.constant 9.99999974E-6 : f32
    %15 = vector.broadcast %cst_10 : f32 to vector<8x1xf32>
    %16 = arith.addf %14, %15 : vector<8x1xf32>
    %17 = math.rsqrt %16 : vector<8x1xf32>
    %18 = arith.mulf %1, %17 : vector<8x1xf32>
    %19 = arith.mulf %7, %18 : vector<8x1xf32>
    %20 = arith.subf %2, %19 : vector<8x1xf32>
    %21 = vector.broadcast %18 : vector<8x1xf32> to vector<8x512xf32>
    %22 = arith.mulf %0, %21 : vector<8x512xf32>
    %23 = vector.broadcast %20 : vector<8x1xf32> to vector<8x512xf32>
    %24 = arith.addf %22, %23 : vector<8x512xf32>
    %cst_11 = arith.constant 0.000000e+00 : f32
    %25 = vector.broadcast %cst_11 : f32 to vector<8x512xf32>
    %26 = arith.maximumf %24, %25 : vector<8x512xf32>
    %c17_i32 = arith.constant 17 : i32
    %27 = tpu.dynamic_rotate %26 by %c17_i32 dim 1 : vector<8x512xf32>, i32 -> vector<8x512xf32>
    %c0_12 = arith.constant 0 : index
    %c0_13 = arith.constant 0 : index
    %c0_14 = arith.constant 0 : index
    %28 = vector.load %arg1[%c0_12, %c0_13, %c0_14] : memref<9x1x512xf32, #tpu.memory_space<vmem>>, vector<1x1x512xf32>
    %29 = vector.shape_cast %28 : vector<1x1x512xf32> to vector<1x512xf32>
    %30 = vector.broadcast %29 : vector<1x512xf32> to vector<8x512xf32>
    %31 = arith.mulf %27, %30 : vector<8x512xf32>
    %c16_i32 = arith.constant 16 : i32
    %32 = tpu.dynamic_rotate %26 by %c16_i32 dim 1 : vector<8x512xf32>, i32 -> vector<8x512xf32>
    %c1 = arith.constant 1 : index
    %c0_15 = arith.constant 0 : index
    %c0_16 = arith.constant 0 : index
    %33 = vector.load %arg1[%c1, %c0_15, %c0_16] : memref<9x1x512xf32, #tpu.memory_space<vmem>>, vector<1x1x512xf32>
    %34 = vector.shape_cast %33 : vector<1x1x512xf32> to vector<1x512xf32>
    %35 = vector.broadcast %34 : vector<1x512xf32> to vector<8x512xf32>
    %36 = arith.mulf %32, %35 : vector<8x512xf32>
    %c15_i32 = arith.constant 15 : i32
    %37 = tpu.dynamic_rotate %26 by %c15_i32 dim 1 : vector<8x512xf32>, i32 -> vector<8x512xf32>
    %c2 = arith.constant 2 : index
    %c0_17 = arith.constant 0 : index
    %c0_18 = arith.constant 0 : index
    %38 = vector.load %arg1[%c2, %c0_17, %c0_18] : memref<9x1x512xf32, #tpu.memory_space<vmem>>, vector<1x1x512xf32>
    %39 = vector.shape_cast %38 : vector<1x1x512xf32> to vector<1x512xf32>
    %40 = vector.broadcast %39 : vector<1x512xf32> to vector<8x512xf32>
    %41 = arith.mulf %37, %40 : vector<8x512xf32>
    %c1_i32 = arith.constant 1 : i32
    %42 = tpu.dynamic_rotate %26 by %c1_i32 dim 1 : vector<8x512xf32>, i32 -> vector<8x512xf32>
    %c3 = arith.constant 3 : index
    %c0_19 = arith.constant 0 : index
    %c0_20 = arith.constant 0 : index
    %43 = vector.load %arg1[%c3, %c0_19, %c0_20] : memref<9x1x512xf32, #tpu.memory_space<vmem>>, vector<1x1x512xf32>
    %44 = vector.shape_cast %43 : vector<1x1x512xf32> to vector<1x512xf32>
    %45 = vector.broadcast %44 : vector<1x512xf32> to vector<8x512xf32>
    %46 = arith.mulf %42, %45 : vector<8x512xf32>
    %c511_i32 = arith.constant 511 : i32
    %47 = tpu.dynamic_rotate %26 by %c511_i32 dim 1 : vector<8x512xf32>, i32 -> vector<8x512xf32>
    %c5 = arith.constant 5 : index
    %c0_21 = arith.constant 0 : index
    %c0_22 = arith.constant 0 : index
    %48 = vector.load %arg1[%c5, %c0_21, %c0_22] : memref<9x1x512xf32, #tpu.memory_space<vmem>>, vector<1x1x512xf32>
    %49 = vector.shape_cast %48 : vector<1x1x512xf32> to vector<1x512xf32>
    %50 = vector.broadcast %49 : vector<1x512xf32> to vector<8x512xf32>
    %51 = arith.mulf %47, %50 : vector<8x512xf32>
    %c497_i32 = arith.constant 497 : i32
    %52 = tpu.dynamic_rotate %26 by %c497_i32 dim 1 : vector<8x512xf32>, i32 -> vector<8x512xf32>
    %c6 = arith.constant 6 : index
    %c0_23 = arith.constant 0 : index
    %c0_24 = arith.constant 0 : index
    %53 = vector.load %arg1[%c6, %c0_23, %c0_24] : memref<9x1x512xf32, #tpu.memory_space<vmem>>, vector<1x1x512xf32>
    %54 = vector.shape_cast %53 : vector<1x1x512xf32> to vector<1x512xf32>
    %55 = vector.broadcast %54 : vector<1x512xf32> to vector<8x512xf32>
    %56 = arith.mulf %52, %55 : vector<8x512xf32>
    %c496_i32 = arith.constant 496 : i32
    %57 = tpu.dynamic_rotate %26 by %c496_i32 dim 1 : vector<8x512xf32>, i32 -> vector<8x512xf32>
    %c7 = arith.constant 7 : index
    %c0_25 = arith.constant 0 : index
    %c0_26 = arith.constant 0 : index
    %58 = vector.load %arg1[%c7, %c0_25, %c0_26] : memref<9x1x512xf32, #tpu.memory_space<vmem>>, vector<1x1x512xf32>
    %59 = vector.shape_cast %58 : vector<1x1x512xf32> to vector<1x512xf32>
    %60 = vector.broadcast %59 : vector<1x512xf32> to vector<8x512xf32>
    %61 = arith.mulf %57, %60 : vector<8x512xf32>
    %c495_i32 = arith.constant 495 : i32
    %62 = tpu.dynamic_rotate %26 by %c495_i32 dim 1 : vector<8x512xf32>, i32 -> vector<8x512xf32>
    %c8 = arith.constant 8 : index
    %c0_27 = arith.constant 0 : index
    %c0_28 = arith.constant 0 : index
    %63 = vector.load %arg1[%c8, %c0_27, %c0_28] : memref<9x1x512xf32, #tpu.memory_space<vmem>>, vector<1x1x512xf32>
    %64 = vector.shape_cast %63 : vector<1x1x512xf32> to vector<1x512xf32>
    %65 = vector.broadcast %64 : vector<1x512xf32> to vector<8x512xf32>
    %66 = arith.mulf %62, %65 : vector<8x512xf32>
    %67 = tpu.concatenate %31, %36, %41, %46, %26, %51, %56, %61, %66 in 0 : vector<8x512xf32>, vector<8x512xf32>, vector<8x512xf32>, vector<8x512xf32>, vector<8x512xf32>, vector<8x512xf32>, vector<8x512xf32>, vector<8x512xf32>, vector<8x512xf32> -> vector<72x512xf32>
    %68 = arith.truncf %67 : vector<72x512xf32> to vector<72x512xbf16>
    %cst_29 = arith.constant dense<0.000000e+00> : vector<8x512xf32>
    %69 = tpu.matmul %3, %68, %cst_29 {dimension_numbers = #tpu.dot_dimension_numbers<[1], [0], [0], [1], [0, 0, 1, 1], [], []>} : vector<8x72xbf16>, vector<72x512xbf16>, vector<8x512xf32> -> vector<8x512xf32>
    %70 = tpu.concatenate %0, %69 in 0 : vector<8x512xf32>, vector<8x512xf32> -> vector<16x512xf32>
    %c0_30 = arith.constant 0 : index
    %c0_31 = arith.constant 0 : index
    %71 = vector.load %arg5[%c0_30, %c0_31] : memref<16x1xf32, #tpu.memory_space<vmem>>, vector<16x1xf32>
    %c0_32 = arith.constant 0 : index
    %c0_33 = arith.constant 0 : index
    %72 = vector.load %arg6[%c0_32, %c0_33] : memref<16x1xf32, #tpu.memory_space<vmem>>, vector<16x1xf32>
    %c0_34 = arith.constant 0 : index
    %c0_35 = arith.constant 0 : index
    %73 = vector.load %arg7[%c0_34, %c0_35] : memref<8x144xbf16, #tpu.memory_space<vmem>>, vector<8x144xbf16>
    %cst_36 = arith.constant dense<0.000000e+00> : vector<16xf32>
    %74 = vector.multi_reduction <add>, %70, %cst_36 [1] : vector<16x512xf32> to vector<16xf32>
    %75 = vector.shape_cast %74 : vector<16xf32> to vector<16x1xf32>
    %cst_37 = arith.constant 5.120000e+02 : f32
    %76 = vector.broadcast %cst_37 : f32 to vector<16x1xf32>
    %77 = arith.divf %75, %76 : vector<16x1xf32>
    %78 = arith.mulf %70, %70 : vector<16x512xf32>
    %cst_38 = arith.constant dense<0.000000e+00> : vector<16xf32>
    %79 = vector.multi_reduction <add>, %78, %cst_38 [1] : vector<16x512xf32> to vector<16xf32>
    %80 = vector.shape_cast %79 : vector<16xf32> to vector<16x1xf32>
    %cst_39 = arith.constant 5.120000e+02 : f32
    %81 = vector.broadcast %cst_39 : f32 to vector<16x1xf32>
    %82 = arith.divf %80, %81 : vector<16x1xf32>
    %83 = arith.mulf %77, %77 : vector<16x1xf32>
    %84 = arith.subf %82, %83 : vector<16x1xf32>
    %cst_40 = arith.constant 9.99999974E-6 : f32
    %85 = vector.broadcast %cst_40 : f32 to vector<16x1xf32>
    %86 = arith.addf %84, %85 : vector<16x1xf32>
    %87 = math.rsqrt %86 : vector<16x1xf32>
    %88 = arith.mulf %71, %87 : vector<16x1xf32>
    %89 = arith.mulf %77, %88 : vector<16x1xf32>
    %90 = arith.subf %72, %89 : vector<16x1xf32>
    %91 = vector.broadcast %88 : vector<16x1xf32> to vector<16x512xf32>
    %92 = arith.mulf %70, %91 : vector<16x512xf32>
    %93 = vector.broadcast %90 : vector<16x1xf32> to vector<16x512xf32>
    %94 = arith.addf %92, %93 : vector<16x512xf32>
    %cst_41 = arith.constant 0.000000e+00 : f32
    %95 = vector.broadcast %cst_41 : f32 to vector<16x512xf32>
    %96 = arith.maximumf %94, %95 : vector<16x512xf32>
    %c17_i32_42 = arith.constant 17 : i32
    %97 = tpu.dynamic_rotate %96 by %c17_i32_42 dim 1 : vector<16x512xf32>, i32 -> vector<16x512xf32>
    %c0_43 = arith.constant 0 : index
    %c0_44 = arith.constant 0 : index
    %c0_45 = arith.constant 0 : index
    %98 = vector.load %arg1[%c0_43, %c0_44, %c0_45] : memref<9x1x512xf32, #tpu.memory_space<vmem>>, vector<1x1x512xf32>
    %99 = vector.shape_cast %98 : vector<1x1x512xf32> to vector<1x512xf32>
    %100 = vector.broadcast %99 : vector<1x512xf32> to vector<16x512xf32>
    %101 = arith.mulf %97, %100 : vector<16x512xf32>
    %c16_i32_46 = arith.constant 16 : i32
    %102 = tpu.dynamic_rotate %96 by %c16_i32_46 dim 1 : vector<16x512xf32>, i32 -> vector<16x512xf32>
    %c1_47 = arith.constant 1 : index
    %c0_48 = arith.constant 0 : index
    %c0_49 = arith.constant 0 : index
    %103 = vector.load %arg1[%c1_47, %c0_48, %c0_49] : memref<9x1x512xf32, #tpu.memory_space<vmem>>, vector<1x1x512xf32>
    %104 = vector.shape_cast %103 : vector<1x1x512xf32> to vector<1x512xf32>
    %105 = vector.broadcast %104 : vector<1x512xf32> to vector<16x512xf32>
    %106 = arith.mulf %102, %105 : vector<16x512xf32>
    %c15_i32_50 = arith.constant 15 : i32
    %107 = tpu.dynamic_rotate %96 by %c15_i32_50 dim 1 : vector<16x512xf32>, i32 -> vector<16x512xf32>
    %c2_51 = arith.constant 2 : index
    %c0_52 = arith.constant 0 : index
    %c0_53 = arith.constant 0 : index
    %108 = vector.load %arg1[%c2_51, %c0_52, %c0_53] : memref<9x1x512xf32, #tpu.memory_space<vmem>>, vector<1x1x512xf32>
    %109 = vector.shape_cast %108 : vector<1x1x512xf32> to vector<1x512xf32>
    %110 = vector.broadcast %109 : vector<1x512xf32> to vector<16x512xf32>
    %111 = arith.mulf %107, %110 : vector<16x512xf32>
    %c1_i32_54 = arith.constant 1 : i32
    %112 = tpu.dynamic_rotate %96 by %c1_i32_54 dim 1 : vector<16x512xf32>, i32 -> vector<16x512xf32>
    %c3_55 = arith.constant 3 : index
    %c0_56 = arith.constant 0 : index
    %c0_57 = arith.constant 0 : index
    %113 = vector.load %arg1[%c3_55, %c0_56, %c0_57] : memref<9x1x512xf32, #tpu.memory_space<vmem>>, vector<1x1x512xf32>
    %114 = vector.shape_cast %113 : vector<1x1x512xf32> to vector<1x512xf32>
    %115 = vector.broadcast %114 : vector<1x512xf32> to vector<16x512xf32>
    %116 = arith.mulf %112, %115 : vector<16x512xf32>
    %c511_i32_58 = arith.constant 511 : i32
    %117 = tpu.dynamic_rotate %96 by %c511_i32_58 dim 1 : vector<16x512xf32>, i32 -> vector<16x512xf32>
    %c5_59 = arith.constant 5 : index
    %c0_60 = arith.constant 0 : index
    %c0_61 = arith.constant 0 : index
    %118 = vector.load %arg1[%c5_59, %c0_60, %c0_61] : memref<9x1x512xf32, #tpu.memory_space<vmem>>, vector<1x1x512xf32>
    %119 = vector.shape_cast %118 : vector<1x1x512xf32> to vector<1x512xf32>
    %120 = vector.broadcast %119 : vector<1x512xf32> to vector<16x512xf32>
    %121 = arith.mulf %117, %120 : vector<16x512xf32>
    %c497_i32_62 = arith.constant 497 : i32
    %122 = tpu.dynamic_rotate %96 by %c497_i32_62 dim 1 : vector<16x512xf32>, i32 -> vector<16x512xf32>
    %c6_63 = arith.constant 6 : index
    %c0_64 = arith.constant 0 : index
    %c0_65 = arith.constant 0 : index
    %123 = vector.load %arg1[%c6_63, %c0_64, %c0_65] : memref<9x1x512xf32, #tpu.memory_space<vmem>>, vector<1x1x512xf32>
    %124 = vector.shape_cast %123 : vector<1x1x512xf32> to vector<1x512xf32>
    %125 = vector.broadcast %124 : vector<1x512xf32> to vector<16x512xf32>
    %126 = arith.mulf %122, %125 : vector<16x512xf32>
    %c496_i32_66 = arith.constant 496 : i32
    %127 = tpu.dynamic_rotate %96 by %c496_i32_66 dim 1 : vector<16x512xf32>, i32 -> vector<16x512xf32>
    %c7_67 = arith.constant 7 : index
    %c0_68 = arith.constant 0 : index
    %c0_69 = arith.constant 0 : index
    %128 = vector.load %arg1[%c7_67, %c0_68, %c0_69] : memref<9x1x512xf32, #tpu.memory_space<vmem>>, vector<1x1x512xf32>
    %129 = vector.shape_cast %128 : vector<1x1x512xf32> to vector<1x512xf32>
    %130 = vector.broadcast %129 : vector<1x512xf32> to vector<16x512xf32>
    %131 = arith.mulf %127, %130 : vector<16x512xf32>
    %c495_i32_70 = arith.constant 495 : i32
    %132 = tpu.dynamic_rotate %96 by %c495_i32_70 dim 1 : vector<16x512xf32>, i32 -> vector<16x512xf32>
    %c8_71 = arith.constant 8 : index
    %c0_72 = arith.constant 0 : index
    %c0_73 = arith.constant 0 : index
    %133 = vector.load %arg1[%c8_71, %c0_72, %c0_73] : memref<9x1x512xf32, #tpu.memory_space<vmem>>, vector<1x1x512xf32>
    %134 = vector.shape_cast %133 : vector<1x1x512xf32> to vector<1x512xf32>
    %135 = vector.broadcast %134 : vector<1x512xf32> to vector<16x512xf32>
    %136 = arith.mulf %132, %135 : vector<16x512xf32>
    %137 = tpu.concatenate %101, %106, %111, %116, %96, %121, %126, %131, %136 in 0 : vector<16x512xf32>, vector<16x512xf32>, vector<16x512xf32>, vector<16x512xf32>, vector<16x512xf32>, vector<16x512xf32>, vector<16x512xf32>, vector<16x512xf32>, vector<16x512xf32> -> vector<144x512xf32>
    %138 = arith.truncf %137 : vector<144x512xf32> to vector<144x512xbf16>
    %cst_74 = arith.constant dense<0.000000e+00> : vector<8x512xf32>
    %139 = tpu.matmul %73, %138, %cst_74 {dimension_numbers = #tpu.dot_dimension_numbers<[1], [0], [0], [1], [0, 0, 1, 1], [], []>} : vector<8x144xbf16>, vector<144x512xbf16>, vector<8x512xf32> -> vector<8x512xf32>
    %140 = tpu.concatenate %70, %139 in 0 : vector<16x512xf32>, vector<8x512xf32> -> vector<24x512xf32>
    %c0_75 = arith.constant 0 : index
    %c0_76 = arith.constant 0 : index
    %141 = vector.load %arg8[%c0_75, %c0_76] : memref<24x1xf32, #tpu.memory_space<vmem>>, vector<24x1xf32>
    %c0_77 = arith.constant 0 : index
    %c0_78 = arith.constant 0 : index
    %142 = vector.load %arg9[%c0_77, %c0_78] : memref<24x1xf32, #tpu.memory_space<vmem>>, vector<24x1xf32>
    %c0_79 = arith.constant 0 : index
    %c0_80 = arith.constant 0 : index
    %143 = vector.load %arg10[%c0_79, %c0_80] : memref<8x216xbf16, #tpu.memory_space<vmem>>, vector<8x216xbf16>
    %cst_81 = arith.constant dense<0.000000e+00> : vector<24xf32>
    %144 = vector.multi_reduction <add>, %140, %cst_81 [1] : vector<24x512xf32> to vector<24xf32>
    %145 = vector.shape_cast %144 : vector<24xf32> to vector<24x1xf32>
    %cst_82 = arith.constant 5.120000e+02 : f32
    %146 = vector.broadcast %cst_82 : f32 to vector<24x1xf32>
    %147 = arith.divf %145, %146 : vector<24x1xf32>
    %148 = arith.mulf %140, %140 : vector<24x512xf32>
    %cst_83 = arith.constant dense<0.000000e+00> : vector<24xf32>
    %149 = vector.multi_reduction <add>, %148, %cst_83 [1] : vector<24x512xf32> to vector<24xf32>
    %150 = vector.shape_cast %149 : vector<24xf32> to vector<24x1xf32>
    %cst_84 = arith.constant 5.120000e+02 : f32
    %151 = vector.broadcast %cst_84 : f32 to vector<24x1xf32>
    %152 = arith.divf %150, %151 : vector<24x1xf32>
    %153 = arith.mulf %147, %147 : vector<24x1xf32>
    %154 = arith.subf %152, %153 : vector<24x1xf32>
    %cst_85 = arith.constant 9.99999974E-6 : f32
    %155 = vector.broadcast %cst_85 : f32 to vector<24x1xf32>
    %156 = arith.addf %154, %155 : vector<24x1xf32>
    %157 = math.rsqrt %156 : vector<24x1xf32>
    %158 = arith.mulf %141, %157 : vector<24x1xf32>
    %159 = arith.mulf %147, %158 : vector<24x1xf32>
    %160 = arith.subf %142, %159 : vector<24x1xf32>
    %161 = vector.broadcast %158 : vector<24x1xf32> to vector<24x512xf32>
    %162 = arith.mulf %140, %161 : vector<24x512xf32>
    %163 = vector.broadcast %160 : vector<24x1xf32> to vector<24x512xf32>
    %164 = arith.addf %162, %163 : vector<24x512xf32>
    %cst_86 = arith.constant 0.000000e+00 : f32
    %165 = vector.broadcast %cst_86 : f32 to vector<24x512xf32>
    %166 = arith.maximumf %164, %165 : vector<24x512xf32>
    %c17_i32_87 = arith.constant 17 : i32
    %167 = tpu.dynamic_rotate %166 by %c17_i32_87 dim 1 : vector<24x512xf32>, i32 -> vector<24x512xf32>
    %c0_88 = arith.constant 0 : index
    %c0_89 = arith.constant 0 : index
    %c0_90 = arith.constant 0 : index
    %168 = vector.load %arg1[%c0_88, %c0_89, %c0_90] : memref<9x1x512xf32, #tpu.memory_space<vmem>>, vector<1x1x512xf32>
    %169 = vector.shape_cast %168 : vector<1x1x512xf32> to vector<1x512xf32>
    %170 = vector.broadcast %169 : vector<1x512xf32> to vector<24x512xf32>
    %171 = arith.mulf %167, %170 : vector<24x512xf32>
    %c16_i32_91 = arith.constant 16 : i32
    %172 = tpu.dynamic_rotate %166 by %c16_i32_91 dim 1 : vector<24x512xf32>, i32 -> vector<24x512xf32>
    %c1_92 = arith.constant 1 : index
    %c0_93 = arith.constant 0 : index
    %c0_94 = arith.constant 0 : index
    %173 = vector.load %arg1[%c1_92, %c0_93, %c0_94] : memref<9x1x512xf32, #tpu.memory_space<vmem>>, vector<1x1x512xf32>
    %174 = vector.shape_cast %173 : vector<1x1x512xf32> to vector<1x512xf32>
    %175 = vector.broadcast %174 : vector<1x512xf32> to vector<24x512xf32>
    %176 = arith.mulf %172, %175 : vector<24x512xf32>
    %c15_i32_95 = arith.constant 15 : i32
    %177 = tpu.dynamic_rotate %166 by %c15_i32_95 dim 1 : vector<24x512xf32>, i32 -> vector<24x512xf32>
    %c2_96 = arith.constant 2 : index
    %c0_97 = arith.constant 0 : index
    %c0_98 = arith.constant 0 : index
    %178 = vector.load %arg1[%c2_96, %c0_97, %c0_98] : memref<9x1x512xf32, #tpu.memory_space<vmem>>, vector<1x1x512xf32>
    %179 = vector.shape_cast %178 : vector<1x1x512xf32> to vector<1x512xf32>
    %180 = vector.broadcast %179 : vector<1x512xf32> to vector<24x512xf32>
    %181 = arith.mulf %177, %180 : vector<24x512xf32>
    %c1_i32_99 = arith.constant 1 : i32
    %182 = tpu.dynamic_rotate %166 by %c1_i32_99 dim 1 : vector<24x512xf32>, i32 -> vector<24x512xf32>
    %c3_100 = arith.constant 3 : index
    %c0_101 = arith.constant 0 : index
    %c0_102 = arith.constant 0 : index
    %183 = vector.load %arg1[%c3_100, %c0_101, %c0_102] : memref<9x1x512xf32, #tpu.memory_space<vmem>>, vector<1x1x512xf32>
    %184 = vector.shape_cast %183 : vector<1x1x512xf32> to vector<1x512xf32>
    %185 = vector.broadcast %184 : vector<1x512xf32> to vector<24x512xf32>
    %186 = arith.mulf %182, %185 : vector<24x512xf32>
    %c511_i32_103 = arith.constant 511 : i32
    %187 = tpu.dynamic_rotate %166 by %c511_i32_103 dim 1 : vector<24x512xf32>, i32 -> vector<24x512xf32>
    %c5_104 = arith.constant 5 : index
    %c0_105 = arith.constant 0 : index
    %c0_106 = arith.constant 0 : index
    %188 = vector.load %arg1[%c5_104, %c0_105, %c0_106] : memref<9x1x512xf32, #tpu.memory_space<vmem>>, vector<1x1x512xf32>
    %189 = vector.shape_cast %188 : vector<1x1x512xf32> to vector<1x512xf32>
    %190 = vector.broadcast %189 : vector<1x512xf32> to vector<24x512xf32>
    %191 = arith.mulf %187, %190 : vector<24x512xf32>
    %c497_i32_107 = arith.constant 497 : i32
    %192 = tpu.dynamic_rotate %166 by %c497_i32_107 dim 1 : vector<24x512xf32>, i32 -> vector<24x512xf32>
    %c6_108 = arith.constant 6 : index
    %c0_109 = arith.constant 0 : index
    %c0_110 = arith.constant 0 : index
    %193 = vector.load %arg1[%c6_108, %c0_109, %c0_110] : memref<9x1x512xf32, #tpu.memory_space<vmem>>, vector<1x1x512xf32>
    %194 = vector.shape_cast %193 : vector<1x1x512xf32> to vector<1x512xf32>
    %195 = vector.broadcast %194 : vector<1x512xf32> to vector<24x512xf32>
    %196 = arith.mulf %192, %195 : vector<24x512xf32>
    %c496_i32_111 = arith.constant 496 : i32
    %197 = tpu.dynamic_rotate %166 by %c496_i32_111 dim 1 : vector<24x512xf32>, i32 -> vector<24x512xf32>
    %c7_112 = arith.constant 7 : index
    %c0_113 = arith.constant 0 : index
    %c0_114 = arith.constant 0 : index
    %198 = vector.load %arg1[%c7_112, %c0_113, %c0_114] : memref<9x1x512xf32, #tpu.memory_space<vmem>>, vector<1x1x512xf32>
    %199 = vector.shape_cast %198 : vector<1x1x512xf32> to vector<1x512xf32>
    %200 = vector.broadcast %199 : vector<1x512xf32> to vector<24x512xf32>
    %201 = arith.mulf %197, %200 : vector<24x512xf32>
    %c495_i32_115 = arith.constant 495 : i32
    %202 = tpu.dynamic_rotate %166 by %c495_i32_115 dim 1 : vector<24x512xf32>, i32 -> vector<24x512xf32>
    %c8_116 = arith.constant 8 : index
    %c0_117 = arith.constant 0 : index
    %c0_118 = arith.constant 0 : index
    %203 = vector.load %arg1[%c8_116, %c0_117, %c0_118] : memref<9x1x512xf32, #tpu.memory_space<vmem>>, vector<1x1x512xf32>
    %204 = vector.shape_cast %203 : vector<1x1x512xf32> to vector<1x512xf32>
    %205 = vector.broadcast %204 : vector<1x512xf32> to vector<24x512xf32>
    %206 = arith.mulf %202, %205 : vector<24x512xf32>
    %207 = tpu.concatenate %171, %176, %181, %186, %166, %191, %196, %201, %206 in 0 : vector<24x512xf32>, vector<24x512xf32>, vector<24x512xf32>, vector<24x512xf32>, vector<24x512xf32>, vector<24x512xf32>, vector<24x512xf32>, vector<24x512xf32>, vector<24x512xf32> -> vector<216x512xf32>
    %208 = arith.truncf %207 : vector<216x512xf32> to vector<216x512xbf16>
    %cst_119 = arith.constant dense<0.000000e+00> : vector<8x512xf32>
    %209 = tpu.matmul %143, %208, %cst_119 {dimension_numbers = #tpu.dot_dimension_numbers<[1], [0], [0], [1], [0, 0, 1, 1], [], []>} : vector<8x216xbf16>, vector<216x512xbf16>, vector<8x512xf32> -> vector<8x512xf32>
    %210 = tpu.concatenate %140, %209 in 0 : vector<24x512xf32>, vector<8x512xf32> -> vector<32x512xf32>
    %c0_120 = arith.constant 0 : index
    %c0_121 = arith.constant 0 : index
    %211 = vector.load %arg11[%c0_120, %c0_121] : memref<32x512xf32, #tpu.memory_space<vmem>>, vector<32x512xf32>
    tpu.vector_store %arg11[%c0_120, %c0_121], %210 {strides = array<i32>} : memref<32x512xf32, #tpu.memory_space<vmem>>, vector<32x512xf32>,
    return
  }
}

</mosaic_0001>

<llo_original>
// kernel: tpu_custom_call.1
$region0: #{tpu_custom_call.1}
  #allocation0 [shape = 'u32[]', space=smem, size = 0x4, offset = 0x4, fixed_abs, tag = 'smem constant byte address 0x4 - core index']
  #allocation1 [shape = 'u32[144,128]{1,0:T(1,128)}', space=vmem, size = 0x12000, scoped, tag = 'internal scratch']
  %s0 = inlined_call_operand.vmem [shape: f32[8,512], index: 0, kind: input, shape index: {}]
  %s1 = inlined_call_operand.vmem [shape: f32[9,1,512], index: 1, kind: input, shape index: {}]
  %s2 = inlined_call_operand.vmem [shape: f32[8,1], index: 2, kind: input, shape index: {}]
  %s3 = inlined_call_operand.vmem [shape: f32[8,1], index: 3, kind: input, shape index: {}]
  %s4 = inlined_call_operand.vmem [shape: bf16[8,72], index: 4, kind: input, shape index: {}]
  %s5 = inlined_call_operand.vmem [shape: f32[16,1], index: 5, kind: input, shape index: {}]
  %s6 = inlined_call_operand.vmem [shape: f32[16,1], index: 6, kind: input, shape index: {}]
  %s7 = inlined_call_operand.vmem [shape: bf16[8,144], index: 7, kind: input, shape index: {}]
  %s8 = inlined_call_operand.vmem [shape: f32[24,1], index: 8, kind: input, shape index: {}]
  %s9 = inlined_call_operand.vmem [shape: f32[24,1], index: 9, kind: input, shape index: {}]
  %s10 = inlined_call_operand.vmem [shape: bf16[8,216], index: 10, kind: input, shape index: {}]
  %s11 = inlined_call_operand.hbm [shape: f32[32,512], index: 11, kind: output, shape index: {}]
  %s12 = sld [smem:[#allocation0]]
  $region54: #{tpu_custom_call.1} parent=0
    _
  %s14 = ssub.s32 1, %s12
  %s15 = scalar_select 0, %s14, %s12
  $region1: #{tpu_custom_call.1} parent=0
    #allocation2 [shape = 'u8[65536]{0}', space=vmem, size = 0x10000, scoped, tag = 'output window, operand 0, single buffered']
    #allocation3 [shape = 's32[1]{0}', space=sflag, size = 0x4, scoped, tag = 'scoped memory for tpu_custom_call.1']
    %16 = vsyncpa [#allocation3], 0
    // Predicated region
    $region2: #{tpu_custom_call.1} parent=1 // pred_check
      _
    $region3: #{tpu_custom_call.1} parent=1 // pred_check_branch
      %18 = sbr.rel (0) target = $region5
    $region4: #{tpu_custom_call.1} parent=1 // pred_region
      _
    $region5: #{tpu_custom_call.1} parent=1 // pred_fallthru
      _
    // Predicated region
    $region6: #{tpu_custom_call.1} parent=1 // pred_check
      _
    $region7: #{tpu_custom_call.1} parent=1 // pred_check_branch
      %20 = sbr.rel (0) target = $region9
    $region8: #{tpu_custom_call.1} parent=1 // pred_region
      _
    $region9: #{tpu_custom_call.1} parent=1 // pred_fallthru
      _
    // Predicated region
    $region10: #{tpu_custom_call.1} parent=1 // pred_check
      _
    $region11: #{tpu_custom_call.1} parent=1 // pred_check_branch
      %22 = sbr.rel (0) target = $region13
    $region12: #{tpu_custom_call.1} parent=1 // pred_region
      _
    $region13: #{tpu_custom_call.1} parent=1 // pred_fallthru
      _
    // Predicated region
    $region14: #{tpu_custom_call.1} parent=1 // pred_check
      _
    $region15: #{tpu_custom_call.1} parent=1 // pred_check_branch
      %24 = sbr.rel (0) target = $region17
    $region16: #{tpu_custom_call.1} parent=1 // pred_region
      _
    $region17: #{tpu_custom_call.1} parent=1 // pred_fallthru
      _
    // Predicated region
    $region18: #{tpu_custom_call.1} parent=1 // pred_check
      _
    $region19: #{tpu_custom_call.1} parent=1 // pred_check_branch
      %26 = sbr.rel (0) target = $region21
    $region20: #{tpu_custom_call.1} parent=1 // pred_region
      _
    $region21: #{tpu_custom_call.1} parent=1 // pred_fallthru
      _
    // Predicated region
    $region22: #{tpu_custom_call.1} parent=1 // pred_check
      _
    $region23: #{tpu_custom_call.1} parent=1 // pred_check_branch
      %28 = sbr.rel (0) target = $region25
    $region24: #{tpu_custom_call.1} parent=1 // pred_region
      _
    $region25: #{tpu_custom_call.1} parent=1 // pred_fallthru
      _
    // Predicated region
    $region26: #{tpu_custom_call.1} parent=1 // pred_check
      _
    $region27: #{tpu_custom_call.1} parent=1 // pred_check_branch
      %30 = sbr.rel (0) target = $region29
    $region28: #{tpu_custom_call.1} parent=1 // pred_region
      _
    $region29: #{tpu_custom_call.1} parent=1 // pred_fallthru
      _
    // Predicated region
    $region30: #{tpu_custom_call.1} parent=1 // pred_check
      _
    $region31: #{tpu_custom_call.1} parent=1 // pred_check_branch
      %32 = sbr.rel (0) target = $region33
    $region32: #{tpu_custom_call.1} parent=1 // pred_region
      _
    $region33: #{tpu_custom_call.1} parent=1 // pred_fallthru
      _
    // Predicated region
    $region34: #{tpu_custom_call.1} parent=1 // pred_check
      _
    $region35: #{tpu_custom_call.1} parent=1 // pred_check_branch
      %34 = sbr.rel (0) target = $region37
    $region36: #{tpu_custom_call.1} parent=1 // pred_region
      _
    $region37: #{tpu_custom_call.1} parent=1 // pred_fallthru
      _
    // Predicated region
    $region38: #{tpu_custom_call.1} parent=1 // pred_check
      _
    $region39: #{tpu_custom_call.1} parent=1 // pred_check_branch
      %36 = sbr.rel (0) target = $region41
    $region40: #{tpu_custom_call.1} parent=1 // pred_region
      _
    $region41: #{tpu_custom_call.1} parent=1 // pred_fallthru
      _
    // Predicated region
    $region42: #{tpu_custom_call.1} parent=1 // pred_check
      _
    $region43: #{tpu_custom_call.1} parent=1 // pred_check_branch
      %38 = sbr.rel (0) target = $region45
    $region44: #{tpu_custom_call.1} parent=1 // pred_region
      _
    $region45: #{tpu_custom_call.1} parent=1 // pred_fallthru
      _
    %v40 = vld [vmem:[%s0] sm:$0xff]
    %v41 = vld [vmem:[%s0 + $0x8] sm:$0xff]
    %v42 = vld [vmem:[%s0 + $0x10] sm:$0xff]
    %v43 = vld [vmem:[%s0 + $0x18] sm:$0xff]
    %v44 = vld [vmem:[%s2] sm:$0xff]
    %v45 = vld [vmem:[%s3] sm:$0xff]
    %v46 = vld [vmem:[%s4] sm:$0xf]
    %v47 = vadd.f32 %v40, %v41
    %v48 = vadd.f32 %v47, %v42
    %v49 = vadd.f32 %v48, %v43
    %50 = vadd.xlane.f32.xlu0 %v49
    %v51 = vpop.xlane.xlu0 %50
    %v52 = vrcp.pop 512.0
    %v53 = vmul.f32 %v51, %v52
    %v54 = vmul.f32 %v40, %v40
    %v55 = vmul.f32 %v41, %v41
    %v56 = vmul.f32 %v42, %v42
    %v57 = vmul.f32 %v43, %v43
    %v58 = vadd.f32 %v54, %v55
    %v59 = vadd.f32 %v58, %v56
    %v60 = vadd.f32 %v59, %v57
    %61 = vadd.xlane.f32.xlu0 %v60
    %v62 = vpop.xlane.xlu0 %61
    %v63 = vmul.f32 %v62, %v52
    %v64 = vmul.f32 %v53, %v53
    %v65 = vsub.f32 %v63, %v64
    %v66 = vadd.f32 %v65, 1e-05
    %v67 = vrsqrt.pop %v66
    %v68 = vmul.f32 %v44, %v67
    %v69 = vmul.f32 %v53, %v68
    %v70 = vsub.f32 %v45, %v69
    %72 = vset.pattern.permute.xlu0 0
    %73 = vperm.xlu0 %72, %v68
    %v74 = vpop.permute.xlu0 %73
    %v76 = vmul.f32 %v40, %v74
    %v77 = vmul.f32 %v41, %v74
    %v78 = vmul.f32 %v42, %v74
    %v79 = vmul.f32 %v43, %v74
    %81 = vset.pattern.permute.xlu0 0
    %82 = vperm.xlu0 %81, %v70
    %v83 = vpop.permute.xlu0 %82
    %v85 = vadd.f32 %v76, %v83
    %v86 = vadd.f32 %v77, %v83
    %v87 = vadd.f32 %v78, %v83
    %v88 = vadd.f32 %v79, %v83
    %v89 = vmax.f32 %v85, 0.0
    %v90 = vmax.f32 %v86, 0.0
    %v91 = vmax.f32 %v87, 0.0
    %v92 = vmax.f32 %v88, 0.0
    %93 = vrot.lane.b32.xlu0 %v89, 17
    %v94 = vpop.permute.xlu0 %93
    %95 = vrot.lane.b32.xlu0 %v90, 17
    %v96 = vpop.permute.xlu0 %95
    %97 = vrot.lane.b32.xlu0 %v91, 17
    %v98 = vpop.permute.xlu0 %97
    %99 = vrot.lane.b32.xlu0 %v92, 17
    %v100 = vpop.permute.xlu0 %99
    %v101 = vlaneseq
    %v102 = vand.u32 %v101, 127
    %vm103 = vcmp.lt.s32.totalorder %v102, 17
    %v104 = vsel %vm103, %v98, %v100
    %v105 = vsel %vm103, %v96, %v98
    %v106 = vsel %vm103, %v94, %v96
    %v107 = vsel %vm103, %v100, %v94
    %v108 = vld [vmem:[%s1] sm:$0xf]
    %v110 = vlaneseq
    %v111 = vshrl.u32 %v110, 7
    %v112 = vsub.s32 0, %v111
    %v113 = vrot.slane %v108, %v112
    %v114 = vlaneseq
    %v115 = vshrl.u32 %v114, 7
    %v116 = vsub.s32 1, %v115
    %v117 = vrot.slane %v108, %v116
    %v118 = vlaneseq
    %v119 = vshrl.u32 %v118, 7
    %v120 = vsub.s32 2, %v119
    %v121 = vrot.slane %v108, %v120
    %v122 = vlaneseq
    %v123 = vshrl.u32 %v122, 7
    %v124 = vsub.s32 3, %v123
    %v125 = vrot.slane %v108, %v124
    %v130 = vmul.f32 %v107, %v113
    %v131 = vmul.f32 %v106, %v117
    %v132 = vmul.f32 %v105, %v121
    %v133 = vmul.f32 %v104, %v125
    %134 = vrot.lane.b32.xlu0 %v89, 16
    %v135 = vpop.permute.xlu0 %134
    %136 = vrot.lane.b32.xlu0 %v90, 16
    %v137 = vpop.permute.xlu0 %136
    %138 = vrot.lane.b32.xlu0 %v91, 16
    %v139 = vpop.permute.xlu0 %138
    %140 = vrot.lane.b32.xlu0 %v92, 16
    %v141 = vpop.permute.xlu0 %140
    %vm142 = vcmp.lt.s32.totalorder %v102, 16
    %v143 = vsel %vm142, %v139, %v141
    %v144 = vsel %vm142, %v137, %v139
    %v145 = vsel %vm142, %v135, %v137
    %v146 = vsel %vm142, %v141, %v135
    %s147 = scalar_lea.vmem %s1, 4
    %v148 = vld [vmem:[%s147] sm:$0xf]
    %v150 = vlaneseq
    %v151 = vshrl.u32 %v150, 7
    %v152 = vsub.s32 0, %v151
    %v153 = vrot.slane %v148, %v152
    %v154 = vlaneseq
    %v155 = vshrl.u32 %v154, 7
    %v156 = vsub.s32 1, %v155
    %v157 = vrot.slane %v148, %v156
    %v158 = vlaneseq
    %v159 = vshrl.u32 %v158, 7
    %v160 = vsub.s32 2, %v159
    %v161 = vrot.slane %v148, %v160
    %v162 = vlaneseq
    %v163 = vshrl.u32 %v162, 7
    %v164 = vsub.s32 3, %v163
    %v165 = vrot.slane %v148, %v164
    %v170 = vmul.f32 %v146, %v153
    %v171 = vmul.f32 %v145, %v157
    %v172 = vmul.f32 %v144, %v161
    %v173 = vmul.f32 %v143, %v165
    %174 = vrot.lane.b32.xlu0 %v89, 15
    %v175 = vpop.permute.xlu0 %174
    %176 = vrot.lane.b32.xlu0 %v90, 15
    %v177 = vpop.permute.xlu0 %176
    %178 = vrot.lane.b32.xlu0 %v91, 15
    %v179 = vpop.permute.xlu0 %178
    %180 = vrot.lane.b32.xlu0 %v92, 15
    %v181 = vpop.permute.xlu0 %180
    %vm182 = vcmp.lt.s32.totalorder %v102, 15
    %v183 = vsel %vm182, %v179, %v181
    %v184 = vsel %vm182, %v177, %v179
    %v185 = vsel %vm182, %v175, %v177
    %v186 = vsel %vm182, %v181, %v175
    %s187 = scalar_lea.vmem %s1, 8
    %v188 = vld [vmem:[%s187] sm:$0xf]
    %v190 = vlaneseq
    %v191 = vshrl.u32 %v190, 7
    %v192 = vsub.s32 0, %v191
    %v193 = vrot.slane %v188, %v192
    %v194 = vlaneseq
    %v195 = vshrl.u32 %v194, 7
    %v196 = vsub.s32 1, %v195
    %v197 = vrot.slane %v188, %v196
    %v198 = vlaneseq
    %v199 = vshrl.u32 %v198, 7
    %v200 = vsub.s32 2, %v199
    %v201 = vrot.slane %v188, %v200
    %v202 = vlaneseq
    %v203 = vshrl.u32 %v202, 7
    %v204 = vsub.s32 3, %v203
    %v205 = vrot.slane %v188, %v204
    %v210 = vmul.f32 %v186, %v193
    %v211 = vmul.f32 %v185, %v197
    %v212 = vmul.f32 %v184, %v201
    %v213 = vmul.f32 %v183, %v205
    %214 = vrot.lane.b32.xlu0 %v89, 1
    %v215 = vpop.permute.xlu0 %214
    %216 = vrot.lane.b32.xlu0 %v90, 1
    %v217 = vpop.permute.xlu0 %216
    %218 = vrot.lane.b32.xlu0 %v91, 1
    %v219 = vpop.permute.xlu0 %218
    %220 = vrot.lane.b32.xlu0 %v92, 1
    %v221 = vpop.permute.xlu0 %220
    %vm222 = vcmp.lt.s32.totalorder %v102, 1
    %v223 = vsel %vm222, %v219, %v221
    %v224 = vsel %vm222, %v217, %v219
    %v225 = vsel %vm222, %v215, %v217
    %v226 = vsel %vm222, %v221, %v215
    %s227 = scalar_lea.vmem %s1, 12
    %v228 = vld [vmem:[%s227] sm:$0xf]
    %v230 = vlaneseq
    %v231 = vshrl.u32 %v230, 7
    %v232 = vsub.s32 0, %v231
    %v233 = vrot.slane %v228, %v232
    %v234 = vlaneseq
    %v235 = vshrl.u32 %v234, 7
    %v236 = vsub.s32 1, %v235
    %v237 = vrot.slane %v228, %v236
    %v238 = vlaneseq
    %v239 = vshrl.u32 %v238, 7
    %v240 = vsub.s32 2, %v239
    %v241 = vrot.slane %v228, %v240
    %v242 = vlaneseq
    %v243 = vshrl.u32 %v242, 7
    %v244 = vsub.s32 3, %v243
    %v245 = vrot.slane %v228, %v244
    %v250 = vmul.f32 %v226, %v233
    %v251 = vmul.f32 %v225, %v237
    %v252 = vmul.f32 %v224, %v241
    %v253 = vmul.f32 %v223, %v245
    %254 = vrot.lane.b32.xlu0 %v89, 127
    %v255 = vpop.permute.xlu0 %254
    %256 = vrot.lane.b32.xlu0 %v90, 127
    %v257 = vpop.permute.xlu0 %256
    %258 = vrot.lane.b32.xlu0 %v91, 127
    %v259 = vpop.permute.xlu0 %258
    %260 = vrot.lane.b32.xlu0 %v92, 127
    %v261 = vpop.permute.xlu0 %260
    %vm262 = vcmp.lt.s32.totalorder %v102, 127
    %v263 = vsel %vm262, %v259, %v261
    %v264 = vsel %vm262, %v257, %v259
    %v265 = vsel %vm262, %v255, %v257
    %v266 = vsel %vm262, %v261, %v255
    %s267 = scalar_lea.vmem %s1, 20
    %v268 = vld [vmem:[%s267] sm:$0xf]
    %v270 = vlaneseq
    %v271 = vshrl.u32 %v270, 7
    %v272 = vsub.s32 0, %v271
    %v273 = vrot.slane %v268, %v272
    %v274 = vlaneseq
    %v275 = vshrl.u32 %v274, 7
    %v276 = vsub.s32 1, %v275
    %v277 = vrot.slane %v268, %v276
    %v278 = vlaneseq
    %v279 = vshrl.u32 %v278, 7
    %v280 = vsub.s32 2, %v279
    %v281 = vrot.slane %v268, %v280
    %v282 = vlaneseq
    %v283 = vshrl.u32 %v282, 7
    %v284 = vsub.s32 3, %v283
    %v285 = vrot.slane %v268, %v284
    %v290 = vmul.f32 %v265, %v273
    %v291 = vmul.f32 %v264, %v277
    %v292 = vmul.f32 %v263, %v281
    %v293 = vmul.f32 %v266, %v285
    %294 = vrot.lane.b32.xlu0 %v89, 113
    %v295 = vpop.permute.xlu0 %294
    %296 = vrot.lane.b32.xlu0 %v90, 113
    %v297 = vpop.permute.xlu0 %296
    %298 = vrot.lane.b32.xlu0 %v91, 113
    %v299 = vpop.permute.xlu0 %298
    %300 = vrot.lane.b32.xlu0 %v92, 113
    %v301 = vpop.permute.xlu0 %300
    %vm302 = vcmp.lt.s32.totalorder %v102, 113
    %v303 = vsel %vm302, %v299, %v301
    %v304 = vsel %vm302, %v297, %v299
    %v305 = vsel %vm302, %v295, %v297
    %v306 = vsel %vm302, %v301, %v295
    %s307 = scalar_lea.vmem %s1, 24
    %v308 = vld [vmem:[%s307] sm:$0xf]
    %v310 = vlaneseq
    %v311 = vshrl.u32 %v310, 7
    %v312 = vsub.s32 0, %v311
    %v313 = vrot.slane %v308, %v312
    %v314 = vlaneseq
    %v315 = vshrl.u32 %v314, 7
    %v316 = vsub.s32 1, %v315
    %v317 = vrot.slane %v308, %v316
    %v318 = vlaneseq
    %v319 = vshrl.u32 %v318, 7
    %v320 = vsub.s32 2, %v319
    %v321 = vrot.slane %v308, %v320
    %v322 = vlaneseq
    %v323 = vshrl.u32 %v322, 7
    %v324 = vsub.s32 3, %v323
    %v325 = vrot.slane %v308, %v324
    %v330 = vmul.f32 %v305, %v313
    %v331 = vmul.f32 %v304, %v317
    %v332 = vmul.f32 %v303, %v321
    %v333 = vmul.f32 %v306, %v325
    %334 = vrot.lane.b32.xlu0 %v89, 112
    %v335 = vpop.permute.xlu0 %334
    %336 = vrot.lane.b32.xlu0 %v90, 112
    %v337 = vpop.permute.xlu0 %336
    %338 = vrot.lane.b32.xlu0 %v91, 112
    %v339 = vpop.permute.xlu0 %338
    %340 = vrot.lane.b32.xlu0 %v92, 112
    %v341 = vpop.permute.xlu0 %340
    %vm342 = vcmp.lt.s32.totalorder %v102, 112
    %v343 = vsel %vm342, %v339, %v341
    %v344 = vsel %vm342, %v337, %v339
    %v345 = vsel %vm342, %v335, %v337
    %v346 = vsel %vm342, %v341, %v335
    %s347 = scalar_lea.vmem %s1, 28
    %v348 = vld [vmem:[%s347] sm:$0xf]
    %v350 = vlaneseq
    %v351 = vshrl.u32 %v350, 7
    %v352 = vsub.s32 0, %v351
    %v353 = vrot.slane %v348, %v352
    %v354 = vlaneseq
    %v355 = vshrl.u32 %v354, 7
    %v356 = vsub.s32 1, %v355
    %v357 = vrot.slane %v348, %v356
    %v358 = vlaneseq
    %v359 = vshrl.u32 %v358, 7
    %v360 = vsub.s32 2, %v359
    %v361 = vrot.slane %v348, %v360
    %v362 = vlaneseq
    %v363 = vshrl.u32 %v362, 7
    %v364 = vsub.s32 3, %v363
    %v365 = vrot.slane %v348, %v364
    %v370 = vmul.f32 %v345, %v353
    %v371 = vmul.f32 %v344, %v357
    %v372 = vmul.f32 %v343, %v361
    %v373 = vmul.f32 %v346, %v365
    %374 = vrot.lane.b32.xlu0 %v89, 111
    %v375 = vpop.permute.xlu0 %374
    %376 = vrot.lane.b32.xlu0 %v90, 111
    %v377 = vpop.permute.xlu0 %376
    %378 = vrot.lane.b32.xlu0 %v91, 111
    %v379 = vpop.permute.xlu0 %378
    %380 = vrot.lane.b32.xlu0 %v92, 111
    %v381 = vpop.permute.xlu0 %380
    %vm382 = vcmp.lt.s32.totalorder %v102, 111
    %v383 = vsel %vm382, %v379, %v381
    %v384 = vsel %vm382, %v377, %v379
    %v385 = vsel %vm382, %v375, %v377
    %v386 = vsel %vm382, %v381, %v375
    %s387 = scalar_lea.vmem %s1, 32
    %v388 = vld [vmem:[%s387] sm:$0xf]
    %v390 = vlaneseq
    %v391 = vshrl.u32 %v390, 7
    %v392 = vsub.s32 0, %v391
    %v393 = vrot.slane %v388, %v392
    %v394 = vlaneseq
    %v395 = vshrl.u32 %v394, 7
    %v396 = vsub.s32 1, %v395
    %v397 = vrot.slane %v388, %v396
    %v398 = vlaneseq
    %v399 = vshrl.u32 %v398, 7
    %v400 = vsub.s32 2, %v399
    %v401 = vrot.slane %v388, %v400
    %v402 = vlaneseq
    %v403 = vshrl.u32 %v402, 7
    %v404 = vsub.s32 3, %v403
    %v405 = vrot.slane %v388, %v404
    %v410 = vmul.f32 %v385, %v393
    %v411 = vmul.f32 %v384, %v397
    %v412 = vmul.f32 %v383, %v401
    %v413 = vmul.f32 %v386, %v405
    %v414 = vpack.c.bf16 %v170, %v130
    %v415 = vpack.c.bf16 %v171, %v131
    %v416 = vpack.c.bf16 %v172, %v132
    %v417 = vpack.c.bf16 %v173, %v133
    %v418 = vpack.c.bf16 %v250, %v210
    %v419 = vpack.c.bf16 %v251, %v211
    %v420 = vpack.c.bf16 %v252, %v212
    %v421 = vpack.c.bf16 %v253, %v213
    %v422 = vpack.c.bf16 %v290, %v89
    %v423 = vpack.c.bf16 %v291, %v90
    %v424 = vpack.c.bf16 %v292, %v91
    %v425 = vpack.c.bf16 %v293, %v92
    %v426 = vpack.c.bf16 %v370, %v330
    %v427 = vpack.c.bf16 %v371, %v331
    %v428 = vpack.c.bf16 %v372, %v332
    %v429 = vpack.c.bf16 %v373, %v333
    %v430 = vpack.c.bf16 %v410, %v410
    %v431 = vpack.c.bf16 %v411, %v411
    %v432 = vpack.c.bf16 %v412, %v412
    %v433 = vpack.c.bf16 %v413, %v413
    %vm434 = vcmask 588800
    %v436 = vsel %vm434, %v46, 0
    %vm438 = vcmask 1043456
    %v440 = vsel %vm438, %v430, 0
    %v443 = vsel %vm438, %v431, 0
    %v446 = vsel %vm438, %v432, 0
    %v449 = vsel %vm438, %v433, 0
    %451 = vmatprep.subr.bf16.mxu0 0
    %452 = vmatpush1.bf16.msra.mxu0 0
    %453 = vmatprep.subr.bf16.mxu0 0
    %454 = vmatpush1.bf16.msra.mxu0 0
    %455 = vmatprep.subr.bf16.mxu0 0
    %456 = vmatpush1.bf16.msra.mxu0 0
    %457 = vmatprep.subr.bf16.mxu0 %v443
    %458 = vmatpush1.bf16.msra.mxu0 %v440
    %459 = vmatprep.subr.bf16.mxu0 %v427
    %460 = vmatpush1.bf16.msra.mxu0 %v426
    %461 = vmatprep.subr.bf16.mxu0 %v423
    %462 = vmatpush1.bf16.msra.mxu0 %v422
    %463 = vmatprep.subr.bf16.mxu0 %v419
    %464 = vmatpush1.bf16.msra.mxu0 %v418
    %465 = vmatprep.subr.bf16.mxu0 %v415
    %466 = vmatpush1.bf16.msra.mxu0 %v414
    %467 = vmatprep.subr.bf16.mxu0 0
    %468 = vmatpush2.bf16.msra.mxu0 0
    %469 = vmatprep.subr.bf16.mxu0 0
    %470 = vmatpush2.bf16.msra.mxu0 0
    %471 = vmatprep.subr.bf16.mxu0 0
    %472 = vmatpush2.bf16.msra.mxu0 0
    %473 = vmatprep.subr.bf16.mxu0 0
    %474 = vmatpush2.bf16.msra.mxu0 0
    %475 = vmatprep.subr.bf16.mxu0 0
    %476 = vmatpush2.bf16.msra.mxu0 0
    %477 = vmatprep.subr.bf16.mxu0 0
    %478 = vmatpush2.bf16.msra.mxu0 0
    %479 = vmatprep.subr.bf16.mxu0 0
    %480 = vmatpush2.bf16.msra.mxu0 0
    %481 = vmatprep.subr.bf16.mxu0 0
    %482 = vmatpush2.bf16.msra.mxu0 0
    %483 = vmatprep.mubr.bf16.mxu0 0
    %484 = vmatmul.mubr.bf16.gmra.mxu0 %v436
    %v485 = vpop.f32.mrf.mxu0
    %v486 = vadd.f32 0.0, %v485
    %v487 = vpop.f32.mrf.mxu0
    %v488 = vadd.f32 0.0, %v487
    %v489 = vpop.f32.mrf.mxu0
    %v490 = vpop.f32.mrf.mxu0
    %491 = vdwg.mxu0
    %492 = vmatprep.subr.bf16.mxu0 0
    %493 = vmatpush1.bf16.msra.mxu0 0
    %494 = vmatprep.subr.bf16.mxu0 0
    %495 = vmatpush1.bf16.msra.mxu0 0
    %496 = vmatprep.subr.bf16.mxu0 0
    %497 = vmatpush1.bf16.msra.mxu0 0
    %498 = vmatprep.subr.bf16.mxu0 %v449
    %499 = vmatpush1.bf16.msra.mxu0 %v446
    %500 = vmatprep.subr.bf16.mxu0 %v429
    %501 = vmatpush1.bf16.msra.mxu0 %v428
    %502 = vmatprep.subr.bf16.mxu0 %v425
    %503 = vmatpush1.bf16.msra.mxu0 %v424
    %504 = vmatprep.subr.bf16.mxu0 %v421
    %505 = vmatpush1.bf16.msra.mxu0 %v420
    %506 = vmatprep.subr.bf16.mxu0 %v417
    %507 = vmatpush1.bf16.msra.mxu0 %v416
    %508 = vmatprep.subr.bf16.mxu0 0
    %509 = vmatpush2.bf16.msra.mxu0 0
    %510 = vmatprep.subr.bf16.mxu0 0
    %511 = vmatpush2.bf16.msra.mxu0 0
    %512 = vmatprep.subr.bf16.mxu0 0
    %513 = vmatpush2.bf16.msra.mxu0 0
    %514 = vmatprep.subr.bf16.mxu0 0
    %515 = vmatpush2.bf16.msra.mxu0 0
    %516 = vmatprep.subr.bf16.mxu0 0
    %517 = vmatpush2.bf16.msra.mxu0 0
    %518 = vmatprep.subr.bf16.mxu0 0
    %519 = vmatpush2.bf16.msra.mxu0 0
    %520 = vmatprep.subr.bf16.mxu0 0
    %521 = vmatpush2.bf16.msra.mxu0 0
    %522 = vmatprep.subr.bf16.mxu0 0
    %523 = vmatpush2.bf16.msra.mxu0 0
    %524 = vmatprep.mubr.bf16.mxu0 0
    %525 = vmatmul.mubr.bf16.gmra.mxu0 %v436
    %v526 = vpop.f32.mrf.mxu0
    %v527 = vadd.f32 0.0, %v526
    %v528 = vpop.f32.mrf.mxu0
    %v529 = vadd.f32 0.0, %v528
    %v530 = vpop.f32.mrf.mxu0
    %v531 = vpop.f32.mrf.mxu0
    %532 = vdwg.mxu0
    %v533 = vld [vmem:[%s5] sm:$0xff]
    %v534 = vld [vmem:[%s5 + $0x8] sm:$0xff]
    %v535 = vld [vmem:[%s6] sm:$0xff]
    %v536 = vld [vmem:[%s6 + $0x8] sm:$0xff]
    %v537 = vld [vmem:[%s7] sm:$0xff]
    %v538 = vadd.f32 %v486, %v488
    %v539 = vadd.f32 %v538, %v527
    %v540 = vadd.f32 %v539, %v529
    %541 = vadd.xlane.f32.xlu0 %v540
    %v542 = vpop.xlane.xlu0 %541
    %v543 = vmul.f32 %v542, %v52
    %v544 = vmul.f32 %v486, %v486
    %v545 = vmul.f32 %v488, %v488
    %v546 = vmul.f32 %v527, %v527
    %v547 = vmul.f32 %v529, %v529
    %v548 = vadd.f32 %v544, %v545
    %v549 = vadd.f32 %v548, %v546
    %v550 = vadd.f32 %v549, %v547
    %551 = vadd.xlane.f32.xlu0 %v550
    %v552 = vpop.xlane.xlu0 %551
    %v553 = vmul.f32 %v552, %v52
    %v554 = vmul.f32 %v543, %v543
    %v555 = vsub.f32 %v553, %v554
    %v556 = vadd.f32 %v555, 1e-05
    %v557 = vrsqrt.pop %v556
    %v558 = vmul.f32 %v533, %v67
    %v559 = vmul.f32 %v534, %v557
    %v560 = vmul.f32 %v53, %v558
    %v561 = vmul.f32 %v543, %v559
    %v562 = vsub.f32 %v535, %v560
    %v563 = vsub.f32 %v536, %v561
    %565 = vset.pattern.permute.xlu0 0
    %566 = vperm.xlu0 %565, %v558
    %v567 = vpop.permute.xlu0 %566
    %570 = vset.pattern.permute.xlu0 0
    %571 = vperm.xlu0 %570, %v559
    %v572 = vpop.permute.xlu0 %571
    %v574 = vmul.f32 %v40, %v567
    %v575 = vmul.f32 %v41, %v567
    %v576 = vmul.f32 %v42, %v567
    %v577 = vmul.f32 %v43, %v567
    %v578 = vmul.f32 %v486, %v572
    %v579 = vmul.f32 %v488, %v572
    %v580 = vmul.f32 %v527, %v572
    %v581 = vmul.f32 %v529, %v572
    %583 = vset.pattern.permute.xlu0 0
    %584 = vperm.xlu0 %583, %v562
    %v585 = vpop.permute.xlu0 %584
    %588 = vset.pattern.permute.xlu0 0
    %589 = vperm.xlu0 %588, %v563
    %v590 = vpop.permute.xlu0 %589
    %v592 = vadd.f32 %v574, %v585
    %v593 = vadd.f32 %v575, %v585
    %v594 = vadd.f32 %v576, %v585
    %v595 = vadd.f32 %v577, %v585
    %v596 = vadd.f32 %v578, %v590
    %v597 = vadd.f32 %v579, %v590
    %v598 = vadd.f32 %v580, %v590
    %v599 = vadd.f32 %v581, %v590
    %v600 = vmax.f32 %v592, 0.0
    %v601 = vmax.f32 %v593, 0.0
    %v602 = vmax.f32 %v594, 0.0
    %v603 = vmax.f32 %v595, 0.0
    %v604 = vmax.f32 %v596, 0.0
    %v605 = vmax.f32 %v597, 0.0
    %v606 = vmax.f32 %v598, 0.0
    %v607 = vmax.f32 %v599, 0.0
    %608 = vrot.lane.b32.xlu0 %v600, 17
    %v609 = vpop.permute.xlu0 %608
    %610 = vrot.lane.b32.xlu0 %v604, 17
    %v611 = vpop.permute.xlu0 %610
    %612 = vrot.lane.b32.xlu0 %v601, 17
    %v613 = vpop.permute.xlu0 %612
    %614 = vrot.lane.b32.xlu0 %v605, 17
    %v615 = vpop.permute.xlu0 %614
    %616 = vrot.lane.b32.xlu0 %v602, 17
    %v617 = vpop.permute.xlu0 %616
    %618 = vrot.lane.b32.xlu0 %v606, 17
    %v619 = vpop.permute.xlu0 %618
    %620 = vrot.lane.b32.xlu0 %v603, 17
    %v621 = vpop.permute.xlu0 %620
    %622 = vrot.lane.b32.xlu0 %v607, 17
    %v623 = vpop.permute.xlu0 %622
    %v624 = vsel %vm103, %v617, %v621
    %v625 = vsel %vm103, %v619, %v623
    %v626 = vsel %vm103, %v613, %v617
    %v627 = vsel %vm103, %v615, %v619
    %v628 = vsel %vm103, %v609, %v613
    %v629 = vsel %vm103, %v611, %v615
    %v630 = vsel %vm103, %v621, %v609
    %v631 = vsel %vm103, %v623, %v611
    %v632 = vmul.f32 %v630, %v113
    %v633 = vmul.f32 %v628, %v117
    %v634 = vmul.f32 %v626, %v121
    %v635 = vmul.f32 %v624, %v125
    %v636 = vmul.f32 %v631, %v113
    %v637 = vmul.f32 %v629, %v117
    %v638 = vmul.f32 %v627, %v121
    %v639 = vmul.f32 %v625, %v125
    %640 = vrot.lane.b32.xlu0 %v600, 16
    %v641 = vpop.permute.xlu0 %640
    %642 = vrot.lane.b32.xlu0 %v604, 16
    %v643 = vpop.permute.xlu0 %642
    %644 = vrot.lane.b32.xlu0 %v601, 16
    %v645 = vpop.permute.xlu0 %644
    %646 = vrot.lane.b32.xlu0 %v605, 16
    %v647 = vpop.permute.xlu0 %646
    %648 = vrot.lane.b32.xlu0 %v602, 16
    %v649 = vpop.permute.xlu0 %648
    %650 = vrot.lane.b32.xlu0 %v606, 16
    %v651 = vpop.permute.xlu0 %650
    %652 = vrot.lane.b32.xlu0 %v603, 16
    %v653 = vpop.permute.xlu0 %652
    %654 = vrot.lane.b32.xlu0 %v607, 16
    %v655 = vpop.permute.xlu0 %654
    %v656 = vsel %vm142, %v649, %v653
    %v657 = vsel %vm142, %v651, %v655
    %v658 = vsel %vm142, %v645, %v649
    %v659 = vsel %vm142, %v647, %v651
    %v660 = vsel %vm142, %v641, %v645
    %v661 = vsel %vm142, %v643, %v647
    %v662 = vsel %vm142, %v653, %v641
    %v663 = vsel %vm142, %v655, %v643
    %v664 = vmul.f32 %v662, %v153
    %v665 = vmul.f32 %v660, %v157
    %v666 = vmul.f32 %v658, %v161
    %v667 = vmul.f32 %v656, %v165
    %v668 = vmul.f32 %v663, %v153
    %v669 = vmul.f32 %v661, %v157
    %v670 = vmul.f32 %v659, %v161
    %v671 = vmul.f32 %v657, %v165
    %672 = vrot.lane.b32.xlu0 %v600, 15
    %v673 = vpop.permute.xlu0 %672
    %674 = vrot.lane.b32.xlu0 %v604, 15
    %v675 = vpop.permute.xlu0 %674
    %676 = vrot.lane.b32.xlu0 %v601, 15
    %v677 = vpop.permute.xlu0 %676
    %678 = vrot.lane.b32.xlu0 %v605, 15
    %v679 = vpop.permute.xlu0 %678
    %680 = vrot.lane.b32.xlu0 %v602, 15
    %v681 = vpop.permute.xlu0 %680
    %682 = vrot.lane.b32.xlu0 %v606, 15
    %v683 = vpop.permute.xlu0 %682
    %684 = vrot.lane.b32.xlu0 %v603, 15
    %v685 = vpop.permute.xlu0 %684
    %686 = vrot.lane.b32.xlu0 %v607, 15
    %v687 = vpop.permute.xlu0 %686
    %v688 = vsel %vm182, %v681, %v685
    %v689 = vsel %vm182, %v683, %v687
    %v690 = vsel %vm182, %v677, %v681
    %v691 = vsel %vm182, %v679, %v683
    %v692 = vsel %vm182, %v673, %v677
    %v693 = vsel %vm182, %v675, %v679
    %v694 = vsel %vm182, %v685, %v673
    %v695 = vsel %vm182, %v687, %v675
    %v696 = vmul.f32 %v694, %v193
    %v697 = vmul.f32 %v692, %v197
    %v698 = vmul.f32 %v690, %v201
    %v699 = vmul.f32 %v688, %v205
    %v700 = vmul.f32 %v695, %v193
    %v701 = vmul.f32 %v693, %v197
    %v702 = vmul.f32 %v691, %v201
    %v703 = vmul.f32 %v689, %v205
    %704 = vrot.lane.b32.xlu0 %v600, 1
    %v705 = vpop.permute.xlu0 %704
    %706 = vrot.lane.b32.xlu0 %v604, 1
    %v707 = vpop.permute.xlu0 %706
    %708 = vrot.lane.b32.xlu0 %v601, 1
    %v709 = vpop.permute.xlu0 %708
    %710 = vrot.lane.b32.xlu0 %v605, 1
    %v711 = vpop.permute.xlu0 %710
    %712 = vrot.lane.b32.xlu0 %v602, 1
    %v713 = vpop.permute.xlu0 %712
    %714 = vrot.lane.b32.xlu0 %v606, 1
    %v715 = vpop.permute.xlu0 %714
    %716 = vrot.lane.b32.xlu0 %v603, 1
    %v717 = vpop.permute.xlu0 %716
    %718 = vrot.lane.b32.xlu0 %v607, 1
    %v719 = vpop.permute.xlu0 %718
    %v720 = vsel %vm222, %v713, %v717
    %v721 = vsel %vm222, %v715, %v719
    %v722 = vsel %vm222, %v709, %v713
    %v723 = vsel %vm222, %v711, %v715
    %v724 = vsel %vm222, %v705, %v709
    %v725 = vsel %vm222, %v707, %v711
    %v726 = vsel %vm222, %v717, %v705
    %v727 = vsel %vm222, %v719, %v707
    %v728 = vmul.f32 %v726, %v233
    %v729 = vmul.f32 %v724, %v237
    %v730 = vmul.f32 %v722, %v241
    %v731 = vmul.f32 %v720, %v245
    %v732 = vmul.f32 %v727, %v233
    %v733 = vmul.f32 %v725, %v237
    %v734 = vmul.f32 %v723, %v241
    %v735 = vmul.f32 %v721, %v245
    %736 = vrot.lane.b32.xlu0 %v600, 127
    %v737 = vpop.permute.xlu0 %736
    %738 = vrot.lane.b32.xlu0 %v604, 127
    %v739 = vpop.permute.xlu0 %738
    %740 = vrot.lane.b32.xlu0 %v601, 127
    %v741 = vpop.permute.xlu0 %740
    %742 = vrot.lane.b32.xlu0 %v605, 127
    %v743 = vpop.permute.xlu0 %742
    %744 = vrot.lane.b32.xlu0 %v602, 127
    %v745 = vpop.permute.xlu0 %744
    %746 = vrot.lane.b32.xlu0 %v606, 127
    %v747 = vpop.permute.xlu0 %746
    %748 = vrot.lane.b32.xlu0 %v603, 127
    %v749 = vpop.permute.xlu0 %748
    %750 = vrot.lane.b32.xlu0 %v607, 127
    %v751 = vpop.permute.xlu0 %750
    %v752 = vsel %vm262, %v745, %v749
    %v753 = vsel %vm262, %v747, %v751
    %v754 = vsel %vm262, %v741, %v745
    %v755 = vsel %vm262, %v743, %v747
    %v756 = vsel %vm262, %v737, %v741
    %v757 = vsel %vm262, %v739, %v743
    %v758 = vsel %vm262, %v749, %v737
    %v759 = vsel %vm262, %v751, %v739
    %v760 = vmul.f32 %v756, %v273
    %v761 = vmul.f32 %v754, %v277
    %v762 = vmul.f32 %v752, %v281
    %v763 = vmul.f32 %v758, %v285
    %v764 = vmul.f32 %v757, %v273
    %v765 = vmul.f32 %v755, %v277
    %v766 = vmul.f32 %v753, %v281
    %v767 = vmul.f32 %v759, %v285
    %768 = vrot.lane.b32.xlu0 %v600, 113
    %v769 = vpop.permute.xlu0 %768
    %770 = vrot.lane.b32.xlu0 %v604, 113
    %v771 = vpop.permute.xlu0 %770
    %772 = vrot.lane.b32.xlu0 %v601, 113
    %v773 = vpop.permute.xlu0 %772
    %774 = vrot.lane.b32.xlu0 %v605, 113
    %v775 = vpop.permute.xlu0 %774
    %776 = vrot.lane.b32.xlu0 %v602, 113
    %v777 = vpop.permute.xlu0 %776
    %778 = vrot.lane.b32.xlu0 %v606, 113
    %v779 = vpop.permute.xlu0 %778
    %780 = vrot.lane.b32.xlu0 %v603, 113
    %v781 = vpop.permute.xlu0 %780
    %782 = vrot.lane.b32.xlu0 %v607, 113
    %v783 = vpop.permute.xlu0 %782
    %v784 = vsel %vm302, %v777, %v781
    %v785 = vsel %vm302, %v779, %v783
    %v786 = vsel %vm302, %v773, %v777
    %v787 = vsel %vm302, %v775, %v779
    %v788 = vsel %vm302, %v769, %v773
    %v789 = vsel %vm302, %v771, %v775
    %v790 = vsel %vm302, %v781, %v769
    %v791 = vsel %vm302, %v783, %v771
    %v792 = vmul.f32 %v788, %v313
    %v793 = vmul.f32 %v786, %v317
    %v794 = vmul.f32 %v784, %v321
    %v795 = vmul.f32 %v790, %v325
    %v796 = vmul.f32 %v789, %v313
    %v797 = vmul.f32 %v787, %v317
    %v798 = vmul.f32 %v785, %v321
    %v799 = vmul.f32 %v791, %v325
    %800 = vrot.lane.b32.xlu0 %v600, 112
    %v801 = vpop.permute.xlu0 %800
    %802 = vrot.lane.b32.xlu0 %v604, 112
    %v803 = vpop.permute.xlu0 %802
    %804 = vrot.lane.b32.xlu0 %v601, 112
    %v805 = vpop.permute.xlu0 %804
    %806 = vrot.lane.b32.xlu0 %v605, 112
    %v807 = vpop.permute.xlu0 %806
    %808 = vrot.lane.b32.xlu0 %v602, 112
    %v809 = vpop.permute.xlu0 %808
    %810 = vrot.lane.b32.xlu0 %v606, 112
    %v811 = vpop.permute.xlu0 %810
    %812 = vrot.lane.b32.xlu0 %v603, 112
    %v813 = vpop.permute.xlu0 %812
    %814 = vrot.lane.b32.xlu0 %v607, 112
    %v815 = vpop.permute.xlu0 %814
    %v816 = vsel %vm342, %v809, %v813
    %v817 = vsel %vm342, %v811, %v815
    %v818 = vsel %vm342, %v805, %v809
    %v819 = vsel %vm342, %v807, %v811
    %v820 = vsel %vm342, %v801, %v805
    %v821 = vsel %vm342, %v803, %v807
    %v822 = vsel %vm342, %v813, %v801
    %v823 = vsel %vm342, %v815, %v803
    %v824 = vmul.f32 %v820, %v353
    %v825 = vmul.f32 %v818, %v357
    %v826 = vmul.f32 %v816, %v361
    %v827 = vmul.f32 %v822, %v365
    %v828 = vmul.f32 %v821, %v353
    %v829 = vmul.f32 %v819, %v357
    %v830 = vmul.f32 %v817, %v361
    %v831 = vmul.f32 %v823, %v365
    %832 = vrot.lane.b32.xlu0 %v600, 111
    %v833 = vpop.permute.xlu0 %832
    %834 = vrot.lane.b32.xlu0 %v604, 111
    %v835 = vpop.permute.xlu0 %834
    %836 = vrot.lane.b32.xlu0 %v601, 111
    %v837 = vpop.permute.xlu0 %836
    %838 = vrot.lane.b32.xlu0 %v605, 111
    %v839 = vpop.permute.xlu0 %838
    %840 = vrot.lane.b32.xlu0 %v602, 111
    %v841 = vpop.permute.xlu0 %840
    %842 = vrot.lane.b32.xlu0 %v606, 111
    %v843 = vpop.permute.xlu0 %842
    %844 = vrot.lane.b32.xlu0 %v603, 111
    %v845 = vpop.permute.xlu0 %844
    %846 = vrot.lane.b32.xlu0 %v607, 111
    %v847 = vpop.permute.xlu0 %846
    %v848 = vsel %vm382, %v841, %v845
    %v849 = vsel %vm382, %v843, %v847
    %v850 = vsel %vm382, %v837, %v841
    %v851 = vsel %vm382, %v839, %v843
    %v852 = vsel %vm382, %v833, %v837
    %v853 = vsel %vm382, %v835, %v839
    %v854 = vsel %vm382, %v845, %v833
    %v855 = vsel %vm382, %v847, %v835
    %v856 = vmul.f32 %v852, %v393
    %v857 = vmul.f32 %v850, %v397
    %v858 = vmul.f32 %v848, %v401
    %v859 = vmul.f32 %v854, %v405
    %v860 = vmul.f32 %v853, %v393
    %v861 = vmul.f32 %v851, %v397
    %v862 = vmul.f32 %v849, %v401
    %v863 = vmul.f32 %v855, %v405
    %v864 = vpack.c.bf16 %v636, %v632
    %v865 = vpack.c.bf16 %v637, %v633
    %v866 = vpack.c.bf16 %v638, %v634
    %v867 = vpack.c.bf16 %v639, %v635
    %v868 = vpack.c.bf16 %v668, %v664
    %v869 = vpack.c.bf16 %v669, %v665
    %v870 = vpack.c.bf16 %v670, %v666
    %v871 = vpack.c.bf16 %v671, %v667
    %v872 = vpack.c.bf16 %v700, %v696
    %v873 = vpack.c.bf16 %v701, %v697
    %v874 = vpack.c.bf16 %v702, %v698
    %v875 = vpack.c.bf16 %v703, %v699
    %v876 = vpack.c.bf16 %v732, %v728
    %v877 = vpack.c.bf16 %v733, %v729
    %v878 = vpack.c.bf16 %v734, %v730
    %v879 = vpack.c.bf16 %v735, %v731
    %v880 = vpack.c.bf16 %v604, %v600
    %v881 = vpack.c.bf16 %v605, %v601
    %v882 = vpack.c.bf16 %v606, %v602
    %v883 = vpack.c.bf16 %v607, %v603
    %v884 = vpack.c.bf16 %v764, %v760
    %v885 = vpack.c.bf16 %v765, %v761
    %v886 = vpack.c.bf16 %v766, %v762
    %v887 = vpack.c.bf16 %v767, %v763
    %v888 = vpack.c.bf16 %v796, %v792
    %v889 = vpack.c.bf16 %v797, %v793
    %v890 = vpack.c.bf16 %v798, %v794
    %v891 = vpack.c.bf16 %v799, %v795
    %v892 = vpack.c.bf16 %v828, %v824
    %v893 = vpack.c.bf16 %v829, %v825
    %v894 = vpack.c.bf16 %v830, %v826
    %v895 = vpack.c.bf16 %v831, %v827
    %v896 = vpack.c.bf16 %v860, %v856
    %v897 = vpack.c.bf16 %v861, %v857
    %v898 = vpack.c.bf16 %v862, %v858
    %v899 = vpack.c.bf16 %v863, %v859
    %v901 = vunpack.c.l.b16 %v537
    %v902 = vunpack.c.h.b16 %v537
    %v903 = vpack.c.b16 %v901, %v901
    %v904 = vpack.c.b16 %v902, %v902
    %vm906 = vcmask 130048
    %v908 = vsel %vm906, %v904, 0
    %910 = vmatprep.subr.bf16.mxu0 %v893
    %911 = vmatpush1.bf16.msra.mxu0 %v892
    %912 = vmatprep.subr.bf16.mxu0 %v889
    %913 = vmatpush1.bf16.msra.mxu0 %v888
    %914 = vmatprep.subr.bf16.mxu0 %v885
    %915 = vmatpush1.bf16.msra.mxu0 %v884
    %916 = vmatprep.subr.bf16.mxu0 %v881
    %917 = vmatpush1.bf16.msra.mxu0 %v880
    %918 = vmatprep.subr.bf16.mxu0 %v877
    %919 = vmatpush1.bf16.msra.mxu0 %v876
    %920 = vmatprep.subr.bf16.mxu0 %v873
    %921 = vmatpush1.bf16.msra.mxu0 %v872
    %922 = vmatprep.subr.bf16.mxu0 %v869
    %923 = vmatpush1.bf16.msra.mxu0 %v868
    %924 = vmatprep.subr.bf16.mxu0 %v865
    %925 = vmatpush1.bf16.msra.mxu0 %v864
    %926 = vmatprep.subr.bf16.mxu0 0
    %927 = vmatpush2.bf16.msra.mxu0 0
    %928 = vmatprep.subr.bf16.mxu0 0
    %929 = vmatpush2.bf16.msra.mxu0 0
    %930 = vmatprep.subr.bf16.mxu0 0
    %931 = vmatpush2.bf16.msra.mxu0 0
    %932 = vmatprep.subr.bf16.mxu0 0
    %933 = vmatpush2.bf16.msra.mxu0 0
    %934 = vmatprep.subr.bf16.mxu0 0
    %935 = vmatpush2.bf16.msra.mxu0 0
    %936 = vmatprep.subr.bf16.mxu0 0
    %937 = vmatpush2.bf16.msra.mxu0 0
    %938 = vmatprep.subr.bf16.mxu0 0
    %939 = vmatpush2.bf16.msra.mxu0 0
    %940 = vmatprep.subr.bf16.mxu0 %v897
    %941 = vmatpush2.bf16.msra.mxu0 %v896
    %942 = vmatprep.mubr.bf16.mxu0 %v908
    %943 = vmatmul.mubr.bf16.gmra.mxu0 %v903
    %v944 = vpop.f32.mrf.mxu0
    %v945 = vadd.f32 0.0, %v944
    %v946 = vpop.f32.mrf.mxu0
    %v947 = vadd.f32 0.0, %v946
    %v948 = vpop.f32.mrf.mxu0
    %v949 = vpop.f32.mrf.mxu0
    %950 = vdwg.mxu0
    %951 = vmatprep.subr.bf16.mxu0 %v895
    %952 = vmatpush1.bf16.msra.mxu0 %v894
    %953 = vmatprep.subr.bf16.mxu0 %v891
    %954 = vmatpush1.bf16.msra.mxu0 %v890
    %955 = vmatprep.subr.bf16.mxu0 %v887
    %956 = vmatpush1.bf16.msra.mxu0 %v886
    %957 = vmatprep.subr.bf16.mxu0 %v883
    %958 = vmatpush1.bf16.msra.mxu0 %v882
    %959 = vmatprep.subr.bf16.mxu0 %v879
    %960 = vmatpush1.bf16.msra.mxu0 %v878
    %961 = vmatprep.subr.bf16.mxu0 %v875
    %962 = vmatpush1.bf16.msra.mxu0 %v874
    %963 = vmatprep.subr.bf16.mxu0 %v871
    %964 = vmatpush1.bf16.msra.mxu0 %v870
    %965 = vmatprep.subr.bf16.mxu0 %v867
    %966 = vmatpush1.bf16.msra.mxu0 %v866
    %967 = vmatprep.subr.bf16.mxu0 0
    %968 = vmatpush2.bf16.msra.mxu0 0
    %969 = vmatprep.subr.bf16.mxu0 0
    %970 = vmatpush2.bf16.msra.mxu0 0
    %971 = vmatprep.subr.bf16.mxu0 0
    %972 = vmatpush2.bf16.msra.mxu0 0
    %973 = vmatprep.subr.bf16.mxu0 0
    %974 = vmatpush2.bf16.msra.mxu0 0
    %975 = vmatprep.subr.bf16.mxu0 0
    %976 = vmatpush2.bf16.msra.mxu0 0
    %977 = vmatprep.subr.bf16.mxu0 0
    %978 = vmatpush2.bf16.msra.mxu0 0
    %979 = vmatprep.subr.bf16.mxu0 0
    %980 = vmatpush2.bf16.msra.mxu0 0
    %981 = vmatprep.subr.bf16.mxu0 %v899
    %982 = vmatpush2.bf16.msra.mxu0 %v898
    %983 = vmatprep.mubr.bf16.mxu0 %v908
    %984 = vmatmul.mubr.bf16.gmra.mxu0 %v903
    %v985 = vpop.f32.mrf.mxu0
    %v986 = vadd.f32 0.0, %v985
    %v987 = vpop.f32.mrf.mxu0
    %v988 = vadd.f32 0.0, %v987
    %v989 = vpop.f32.mrf.mxu0
    %v990 = vpop.f32.mrf.mxu0
    %991 = vdwg.mxu0
    %v992 = vld [vmem:[%s8] sm:$0xff]
    %v993 = vld [vmem:[%s8 + $0x8] sm:$0xff]
    %v994 = vld [vmem:[%s8 + $0x10] sm:$0xff]
    %v995 = vld [vmem:[%s9] sm:$0xff]
    %v996 = vld [vmem:[%s9 + $0x8] sm:$0xff]
    %v997 = vld [vmem:[%s9 + $0x10] sm:$0xff]
    %v998 = vld [vmem:[%s10] sm:$0xff]
    %v999 = vadd.f32 %v945, %v947
    %v1000 = vadd.f32 %v999, %v986
    %v1001 = vadd.f32 %v1000, %v988
    %1002 = vadd.xlane.f32.xlu0 %v1001
    %v1003 = vpop.xlane.xlu0 %1002
    %v1004 = vmul.f32 %v1003, %v52
    %v1005 = vmul.f32 %v945, %v945
    %v1006 = vmul.f32 %v947, %v947
    %v1007 = vmul.f32 %v986, %v986
    %v1008 = vmul.f32 %v988, %v988
    %v1009 = vadd.f32 %v1005, %v1006
    %v1010 = vadd.f32 %v1009, %v1007
    %v1011 = vadd.f32 %v1010, %v1008
    %1012 = vadd.xlane.f32.xlu0 %v1011
    %v1013 = vpop.xlane.xlu0 %1012
    %v1014 = vmul.f32 %v1013, %v52
    %v1015 = vmul.f32 %v1004, %v1004
    %v1016 = vsub.f32 %v1014, %v1015
    %v1017 = vadd.f32 %v1016, 1e-05
    %v1018 = vrsqrt.pop %v1017
    %v1019 = vmul.f32 %v992, %v67
    %v1020 = vmul.f32 %v993, %v557
    %v1021 = vmul.f32 %v994, %v1018
    %v1022 = vmul.f32 %v53, %v1019
    %v1023 = vmul.f32 %v543, %v1020
    %v1024 = vmul.f32 %v1004, %v1021
    %v1025 = vsub.f32 %v995, %v1022
    %v1026 = vsub.f32 %v996, %v1023
    %v1027 = vsub.f32 %v997, %v1024
    %1029 = vset.pattern.permute.xlu0 0
    %1030 = vperm.xlu0 %1029, %v1019
    %v1031 = vpop.permute.xlu0 %1030
    %1034 = vset.pattern.permute.xlu0 0
    %1035 = vperm.xlu0 %1034, %v1020
    %v1036 = vpop.permute.xlu0 %1035
    %1039 = vset.pattern.permute.xlu0 0
    %1040 = vperm.xlu0 %1039, %v1021
    %v1041 = vpop.permute.xlu0 %1040
    %v1043 = vmul.f32 %v40, %v1031
    %v1044 = vmul.f32 %v41, %v1031
    %v1045 = vmul.f32 %v42, %v1031
    %v1046 = vmul.f32 %v43, %v1031
    %v1047 = vmul.f32 %v486, %v1036
    %v1048 = vmul.f32 %v488, %v1036
    %v1049 = vmul.f32 %v527, %v1036
    %v1050 = vmul.f32 %v529, %v1036
    %v1051 = vmul.f32 %v945, %v1041
    %v1052 = vmul.f32 %v947, %v1041
    %v1053 = vmul.f32 %v986, %v1041
    %v1054 = vmul.f32 %v988, %v1041
    %1056 = vset.pattern.permute.xlu0 0
    %1057 = vperm.xlu0 %1056, %v1025
    %v1058 = vpop.permute.xlu0 %1057
    %1061 = vset.pattern.permute.xlu0 0
    %1062 = vperm.xlu0 %1061, %v1026
    %v1063 = vpop.permute.xlu0 %1062
    %1066 = vset.pattern.permute.xlu0 0
    %1067 = vperm.xlu0 %1066, %v1027
    %v1068 = vpop.permute.xlu0 %1067
    %v1070 = vadd.f32 %v1043, %v1058
    %v1071 = vadd.f32 %v1044, %v1058
    %v1072 = vadd.f32 %v1045, %v1058
    %v1073 = vadd.f32 %v1046, %v1058
    %v1074 = vadd.f32 %v1047, %v1063
    %v1075 = vadd.f32 %v1048, %v1063
    %v1076 = vadd.f32 %v1049, %v1063
    %v1077 = vadd.f32 %v1050, %v1063
    %v1078 = vadd.f32 %v1051, %v1068
    %v1079 = vadd.f32 %v1052, %v1068
    %v1080 = vadd.f32 %v1053, %v1068
    %v1081 = vadd.f32 %v1054, %v1068
    %v1082 = vmax.f32 %v1070, 0.0
    %v1083 = vmax.f32 %v1071, 0.0
    %v1084 = vmax.f32 %v1072, 0.0
    %v1085 = vmax.f32 %v1073, 0.0
    %v1086 = vmax.f32 %v1074, 0.0
    %v1087 = vmax.f32 %v1075, 0.0
    %v1088 = vmax.f32 %v1076, 0.0
    %v1089 = vmax.f32 %v1077, 0.0
    %v1090 = vmax.f32 %v1078, 0.0
    %v1091 = vmax.f32 %v1079, 0.0
    %v1092 = vmax.f32 %v1080, 0.0
    %v1093 = vmax.f32 %v1081, 0.0
    %1094 = vrot.lane.b32.xlu0 %v1082, 17
    %v1095 = vpop.permute.xlu0 %1094
    %1096 = vrot.lane.b32.xlu0 %v1086, 17
    %v1097 = vpop.permute.xlu0 %1096
    %1098 = vrot.lane.b32.xlu0 %v1090, 17
    %v1099 = vpop.permute.xlu0 %1098
    %1100 = vrot.lane.b32.xlu0 %v1083, 17
    %v1101 = vpop.permute.xlu0 %1100
    %1102 = vrot.lane.b32.xlu0 %v1087, 17
    %v1103 = vpop.permute.xlu0 %1102
    %1104 = vrot.lane.b32.xlu0 %v1091, 17
    %v1105 = vpop.permute.xlu0 %1104
    %1106 = vrot.lane.b32.xlu0 %v1084, 17
    %v1107 = vpop.permute.xlu0 %1106
    %1108 = vrot.lane.b32.xlu0 %v1088, 17
    %v1109 = vpop.permute.xlu0 %1108
    %1110 = vrot.lane.b32.xlu0 %v1092, 17
    %v1111 = vpop.permute.xlu0 %1110
    %1112 = vrot.lane.b32.xlu0 %v1085, 17
    %v1113 = vpop.permute.xlu0 %1112
    %1114 = vrot.lane.b32.xlu0 %v1089, 17
    %v1115 = vpop.permute.xlu0 %1114
    %1116 = vrot.lane.b32.xlu0 %v1093, 17
    %v1117 = vpop.permute.xlu0 %1116
    %v1118 = vsel %vm103, %v1107, %v1113
    %v1119 = vsel %vm103, %v1109, %v1115
    %v1120 = vsel %vm103, %v1111, %v1117
    %v1121 = vsel %vm103, %v1101, %v1107
    %v1122 = vsel %vm103, %v1103, %v1109
    %v1123 = vsel %vm103, %v1105, %v1111
    %v1124 = vsel %vm103, %v1095, %v1101
    %v1125 = vsel %vm103, %v1097, %v1103
    %v1126 = vsel %vm103, %v1099, %v1105
    %v1127 = vsel %vm103, %v1113, %v1095
    %v1128 = vsel %vm103, %v1115, %v1097
    %v1129 = vsel %vm103, %v1117, %v1099
    %v1130 = vmul.f32 %v1127, %v113
    %v1131 = vmul.f32 %v1124, %v117
    %v1132 = vmul.f32 %v1121, %v121
    %v1133 = vmul.f32 %v1118, %v125
    %v1134 = vmul.f32 %v1128, %v113
    %v1135 = vmul.f32 %v1125, %v117
    %v1136 = vmul.f32 %v1122, %v121
    %v1137 = vmul.f32 %v1119, %v125
    %v1138 = vmul.f32 %v1129, %v113
    %v1139 = vmul.f32 %v1126, %v117
    %v1140 = vmul.f32 %v1123, %v121
    %v1141 = vmul.f32 %v1120, %v125
    %1142 = vrot.lane.b32.xlu0 %v1082, 16
    %v1143 = vpop.permute.xlu0 %1142
    %1144 = vrot.lane.b32.xlu0 %v1086, 16
    %v1145 = vpop.permute.xlu0 %1144
    %1146 = vrot.lane.b32.xlu0 %v1090, 16
    %v1147 = vpop.permute.xlu0 %1146
    %1148 = vrot.lane.b32.xlu0 %v1083, 16
    %v1149 = vpop.permute.xlu0 %1148
    %1150 = vrot.lane.b32.xlu0 %v1087, 16
    %v1151 = vpop.permute.xlu0 %1150
    %1152 = vrot.lane.b32.xlu0 %v1091, 16
    %v1153 = vpop.permute.xlu0 %1152
    %1154 = vrot.lane.b32.xlu0 %v1084, 16
    %v1155 = vpop.permute.xlu0 %1154
    %1156 = vrot.lane.b32.xlu0 %v1088, 16
    %v1157 = vpop.permute.xlu0 %1156
    %1158 = vrot.lane.b32.xlu0 %v1092, 16
    %v1159 = vpop.permute.xlu0 %1158
    %1160 = vrot.lane.b32.xlu0 %v1085, 16
    %v1161 = vpop.permute.xlu0 %1160
    %1162 = vrot.lane.b32.xlu0 %v1089, 16
    %v1163 = vpop.permute.xlu0 %1162
    %1164 = vrot.lane.b32.xlu0 %v1093, 16
    %v1165 = vpop.permute.xlu0 %1164
    %v1166 = vsel %vm142, %v1155, %v1161
    %v1167 = vsel %vm142, %v1157, %v1163
    %v1168 = vsel %vm142, %v1159, %v1165
    %v1169 = vsel %vm142, %v1149, %v1155
    %v1170 = vsel %vm142, %v1151, %v1157
    %v1171 = vsel %vm142, %v1153, %v1159
    %v1172 = vsel %vm142, %v1143, %v1149
    %v1173 = vsel %vm142, %v1145, %v1151
    %v1174 = vsel %vm142, %v1147, %v1153
    %v1175 = vsel %vm142, %v1161, %v1143
    %v1176 = vsel %vm142, %v1163, %v1145
    %v1177 = vsel %vm142, %v1165, %v1147
    %v1178 = vmul.f32 %v1175, %v153
    %v1179 = vmul.f32 %v1172, %v157
    %v1180 = vmul.f32 %v1169, %v161
    %v1181 = vmul.f32 %v1166, %v165
    %v1182 = vmul.f32 %v1176, %v153
    %v1183 = vmul.f32 %v1173, %v157
    %v1184 = vmul.f32 %v1170, %v161
    %v1185 = vmul.f32 %v1167, %v165
    %v1186 = vmul.f32 %v1177, %v153
    %v1187 = vmul.f32 %v1174, %v157
    %v1188 = vmul.f32 %v1171, %v161
    %v1189 = vmul.f32 %v1168, %v165
    %1190 = vrot.lane.b32.xlu0 %v1082, 15
    %v1191 = vpop.permute.xlu0 %1190
    %1192 = vrot.lane.b32.xlu0 %v1086, 15
    %v1193 = vpop.permute.xlu0 %1192
    %1194 = vrot.lane.b32.xlu0 %v1090, 15
    %v1195 = vpop.permute.xlu0 %1194
    %1196 = vrot.lane.b32.xlu0 %v1083, 15
    %v1197 = vpop.permute.xlu0 %1196
    %1198 = vrot.lane.b32.xlu0 %v1087, 15
    %v1199 = vpop.permute.xlu0 %1198
    %1200 = vrot.lane.b32.xlu0 %v1091, 15
    %v1201 = vpop.permute.xlu0 %1200
    %1202 = vrot.lane.b32.xlu0 %v1084, 15
    %v1203 = vpop.permute.xlu0 %1202
    %1204 = vrot.lane.b32.xlu0 %v1088, 15
    %v1205 = vpop.permute.xlu0 %1204
    %1206 = vrot.lane.b32.xlu0 %v1092, 15
    %v1207 = vpop.permute.xlu0 %1206
    %1208 = vrot.lane.b32.xlu0 %v1085, 15
    %v1209 = vpop.permute.xlu0 %1208
    %1210 = vrot.lane.b32.xlu0 %v1089, 15
    %v1211 = vpop.permute.xlu0 %1210
    %1212 = vrot.lane.b32.xlu0 %v1093, 15
    %v1213 = vpop.permute.xlu0 %1212
    %v1214 = vsel %vm182, %v1203, %v1209
    %v1215 = vsel %vm182, %v1205, %v1211
    %v1216 = vsel %vm182, %v1207, %v1213
    %v1217 = vsel %vm182, %v1197, %v1203
    %v1218 = vsel %vm182, %v1199, %v1205
    %v1219 = vsel %vm182, %v1201, %v1207
    %v1220 = vsel %vm182, %v1191, %v1197
    %v1221 = vsel %vm182, %v1193, %v1199
    %v1222 = vsel %vm182, %v1195, %v1201
    %v1223 = vsel %vm182, %v1209, %v1191
    %v1224 = vsel %vm182, %v1211, %v1193
    %v1225 = vsel %vm182, %v1213, %v1195
    %v1226 = vmul.f32 %v1223, %v193
    %v1227 = vmul.f32 %v1220, %v197
    %v1228 = vmul.f32 %v1217, %v201
    %v1229 = vmul.f32 %v1214, %v205
    %v1230 = vmul.f32 %v1224, %v193
    %v1231 = vmul.f32 %v1221, %v197
    %v1232 = vmul.f32 %v1218, %v201
    %v1233 = vmul.f32 %v1215, %v205
    %v1234 = vmul.f32 %v1225, %v193
    %v1235 = vmul.f32 %v1222, %v197
    %v1236 = vmul.f32 %v1219, %v201
    %v1237 = vmul.f32 %v1216, %v205
    %1238 = vrot.lane.b32.xlu0 %v1082, 1
    %v1239 = vpop.permute.xlu0 %1238
    %1240 = vrot.lane.b32.xlu0 %v1086, 1
    %v1241 = vpop.permute.xlu0 %1240
    %1242 = vrot.lane.b32.xlu0 %v1090, 1
    %v1243 = vpop.permute.xlu0 %1242
    %1244 = vrot.lane.b32.xlu0 %v1083, 1
    %v1245 = vpop.permute.xlu0 %1244
    %1246 = vrot.lane.b32.xlu0 %v1087, 1
    %v1247 = vpop.permute.xlu0 %1246
    %1248 = vrot.lane.b32.xlu0 %v1091, 1
    %v1249 = vpop.permute.xlu0 %1248
    %1250 = vrot.lane.b32.xlu0 %v1084, 1
    %v1251 = vpop.permute.xlu0 %1250
    %1252 = vrot.lane.b32.xlu0 %v1088, 1
    %v1253 = vpop.permute.xlu0 %1252
    %1254 = vrot.lane.b32.xlu0 %v1092, 1
    %v1255 = vpop.permute.xlu0 %1254
    %1256 = vrot.lane.b32.xlu0 %v1085, 1
    %v1257 = vpop.permute.xlu0 %1256
    %1258 = vrot.lane.b32.xlu0 %v1089, 1
    %v1259 = vpop.permute.xlu0 %1258
    %1260 = vrot.lane.b32.xlu0 %v1093, 1
    %v1261 = vpop.permute.xlu0 %1260
    %v1262 = vsel %vm222, %v1251, %v1257
    %v1263 = vsel %vm222, %v1253, %v1259
    %v1264 = vsel %vm222, %v1255, %v1261
    %v1265 = vsel %vm222, %v1245, %v1251
    %v1266 = vsel %vm222, %v1247, %v1253
    %v1267 = vsel %vm222, %v1249, %v1255
    %v1268 = vsel %vm222, %v1239, %v1245
    %v1269 = vsel %vm222, %v1241, %v1247
    %v1270 = vsel %vm222, %v1243, %v1249
    %v1271 = vsel %vm222, %v1257, %v1239
    %v1272 = vsel %vm222, %v1259, %v1241
    %v1273 = vsel %vm222, %v1261, %v1243
    %v1274 = vmul.f32 %v1271, %v233
    %v1275 = vmul.f32 %v1268, %v237
    %v1276 = vmul.f32 %v1265, %v241
    %v1277 = vmul.f32 %v1262, %v245
    %v1278 = vmul.f32 %v1272, %v233
    %v1279 = vmul.f32 %v1269, %v237
    %v1280 = vmul.f32 %v1266, %v241
    %v1281 = vmul.f32 %v1263, %v245
    %v1282 = vmul.f32 %v1273, %v233
    %v1283 = vmul.f32 %v1270, %v237
    %v1284 = vmul.f32 %v1267, %v241
    %v1285 = vmul.f32 %v1264, %v245
    %1286 = vrot.lane.b32.xlu0 %v1082, 127
    %v1287 = vpop.permute.xlu0 %1286
    %1288 = vrot.lane.b32.xlu0 %v1086, 127
    %v1289 = vpop.permute.xlu0 %1288
    %1290 = vrot.lane.b32.xlu0 %v1090, 127
    %v1291 = vpop.permute.xlu0 %1290
    %1292 = vrot.lane.b32.xlu0 %v1083, 127
    %v1293 = vpop.permute.xlu0 %1292
    %1294 = vrot.lane.b32.xlu0 %v1087, 127
    %v1295 = vpop.permute.xlu0 %1294
    %1296 = vrot.lane.b32.xlu0 %v1091, 127
    %v1297 = vpop.permute.xlu0 %1296
    %1298 = vrot.lane.b32.xlu0 %v1084, 127
    %v1299 = vpop.permute.xlu0 %1298
    %1300 = vrot.lane.b32.xlu0 %v1088, 127
    %v1301 = vpop.permute.xlu0 %1300
    %1302 = vrot.lane.b32.xlu0 %v1092, 127
    %v1303 = vpop.permute.xlu0 %1302
    %1304 = vrot.lane.b32.xlu0 %v1085, 127
    %v1305 = vpop.permute.xlu0 %1304
    %1306 = vrot.lane.b32.xlu0 %v1089, 127
    %v1307 = vpop.permute.xlu0 %1306
    %1308 = vrot.lane.b32.xlu0 %v1093, 127
    %v1309 = vpop.permute.xlu0 %1308
    %v1310 = vsel %vm262, %v1299, %v1305
    %v1311 = vsel %vm262, %v1301, %v1307
    %v1312 = vsel %vm262, %v1303, %v1309
    %v1313 = vsel %vm262, %v1293, %v1299
    %v1314 = vsel %vm262, %v1295, %v1301
    %v1315 = vsel %vm262, %v1297, %v1303
    %v1316 = vsel %vm262, %v1287, %v1293
    %v1317 = vsel %vm262, %v1289, %v1295
    %v1318 = vsel %vm262, %v1291, %v1297
    %v1319 = vsel %vm262, %v1305, %v1287
    %v1320 = vsel %vm262, %v1307, %v1289
    %v1321 = vsel %vm262, %v1309, %v1291
    %v1322 = vmul.f32 %v1316, %v273
    %v1323 = vmul.f32 %v1313, %v277
    %v1324 = vmul.f32 %v1310, %v281
    %v1325 = vmul.f32 %v1319, %v285
    %v1326 = vmul.f32 %v1317, %v273
    %v1327 = vmul.f32 %v1314, %v277
    %v1328 = vmul.f32 %v1311, %v281
    %v1329 = vmul.f32 %v1320, %v285
    %v1330 = vmul.f32 %v1318, %v273
    %v1331 = vmul.f32 %v1315, %v277
    %v1332 = vmul.f32 %v1312, %v281
    %v1333 = vmul.f32 %v1321, %v285
    %1334 = vrot.lane.b32.xlu0 %v1082, 113
    %v1335 = vpop.permute.xlu0 %1334
    %1336 = vrot.lane.b32.xlu0 %v1086, 113
    %v1337 = vpop.permute.xlu0 %1336
    %1338 = vrot.lane.b32.xlu0 %v1090, 113
    %v1339 = vpop.permute.xlu0 %1338
    %1340 = vrot.lane.b32.xlu0 %v1083, 113
    %v1341 = vpop.permute.xlu0 %1340
    %1342 = vrot.lane.b32.xlu0 %v1087, 113
    %v1343 = vpop.permute.xlu0 %1342
    %1344 = vrot.lane.b32.xlu0 %v1091, 113
    %v1345 = vpop.permute.xlu0 %1344
    %1346 = vrot.lane.b32.xlu0 %v1084, 113
    %v1347 = vpop.permute.xlu0 %1346
    %1348 = vrot.lane.b32.xlu0 %v1088, 113
    %v1349 = vpop.permute.xlu0 %1348
    %1350 = vrot.lane.b32.xlu0 %v1092, 113
    %v1351 = vpop.permute.xlu0 %1350
    %1352 = vrot.lane.b32.xlu0 %v1085, 113
    %v1353 = vpop.permute.xlu0 %1352
    %1354 = vrot.lane.b32.xlu0 %v1089, 113
    %v1355 = vpop.permute.xlu0 %1354
    %1356 = vrot.lane.b32.xlu0 %v1093, 113
    %v1357 = vpop.permute.xlu0 %1356
    %v1358 = vsel %vm302, %v1347, %v1353
    %v1359 = vsel %vm302, %v1349, %v1355
    %v1360 = vsel %vm302, %v1351, %v1357
    %v1361 = vsel %vm302, %v1341, %v1347
    %v1362 = vsel %vm302, %v1343, %v1349
    %v1363 = vsel %vm302, %v1345, %v1351
    %v1364 = vsel %vm302, %v1335, %v1341
    %v1365 = vsel %vm302, %v1337, %v1343
    %v1366 = vsel %vm302, %v1339, %v1345
    %v1367 = vsel %vm302, %v1353, %v1335
    %v1368 = vsel %vm302, %v1355, %v1337
    %v1369 = vsel %vm302, %v1357, %v1339
    %v1370 = vmul.f32 %v1364, %v313
    %v1371 = vmul.f32 %v1361, %v317
    %v1372 = vmul.f32 %v1358, %v321
    %v1373 = vmul.f32 %v1367, %v325
    %v1374 = vmul.f32 %v1365, %v313
    %v1375 = vmul.f32 %v1362, %v317
    %v1376 = vmul.f32 %v1359, %v321
    %v1377 = vmul.f32 %v1368, %v325
    %v1378 = vmul.f32 %v1366, %v313
    %v1379 = vmul.f32 %v1363, %v317
    %v1380 = vmul.f32 %v1360, %v321
    %v1381 = vmul.f32 %v1369, %v325
    %1382 = vrot.lane.b32.xlu0 %v1082, 112
    %v1383 = vpop.permute.xlu0 %1382
    %1384 = vrot.lane.b32.xlu0 %v1086, 112
    %v1385 = vpop.permute.xlu0 %1384
    %1386 = vrot.lane.b32.xlu0 %v1090, 112
    %v1387 = vpop.permute.xlu0 %1386
    %1388 = vrot.lane.b32.xlu0 %v1083, 112
    %v1389 = vpop.permute.xlu0 %1388
    %1390 = vrot.lane.b32.xlu0 %v1087, 112
    %v1391 = vpop.permute.xlu0 %1390
    %1392 = vrot.lane.b32.xlu0 %v1091, 112
    %v1393 = vpop.permute.xlu0 %1392
    %1394 = vrot.lane.b32.xlu0 %v1084, 112
    %v1395 = vpop.permute.xlu0 %1394
    %1396 = vrot.lane.b32.xlu0 %v1088, 112
    %v1397 = vpop.permute.xlu0 %1396
    %1398 = vrot.lane.b32.xlu0 %v1092, 112
    %v1399 = vpop.permute.xlu0 %1398
    %1400 = vrot.lane.b32.xlu0 %v1085, 112
    %v1401 = vpop.permute.xlu0 %1400
    %1402 = vrot.lane.b32.xlu0 %v1089, 112
    %v1403 = vpop.permute.xlu0 %1402
    %1404 = vrot.lane.b32.xlu0 %v1093, 112
    %v1405 = vpop.permute.xlu0 %1404
    %v1406 = vsel %vm342, %v1395, %v1401
    %v1407 = vsel %vm342, %v1397, %v1403
    %v1408 = vsel %vm342, %v1399, %v1405
    %v1409 = vsel %vm342, %v1389, %v1395
    %v1410 = vsel %vm342, %v1391, %v1397
    %v1411 = vsel %vm342, %v1393, %v1399
    %v1412 = vsel %vm342, %v1383, %v1389
    %v1413 = vsel %vm342, %v1385, %v1391
    %v1414 = vsel %vm342, %v1387, %v1393
    %v1415 = vsel %vm342, %v1401, %v1383
    %v1416 = vsel %vm342, %v1403, %v1385
    %v1417 = vsel %vm342, %v1405, %v1387
    %v1418 = vmul.f32 %v1412, %v353
    %v1419 = vmul.f32 %v1409, %v357
    %v1420 = vmul.f32 %v1406, %v361
    %v1421 = vmul.f32 %v1415, %v365
    %v1422 = vmul.f32 %v1413, %v353
    %v1423 = vmul.f32 %v1410, %v357
    %v1424 = vmul.f32 %v1407, %v361
    %v1425 = vmul.f32 %v1416, %v365
    %v1426 = vmul.f32 %v1414, %v353
    %v1427 = vmul.f32 %v1411, %v357
    %v1428 = vmul.f32 %v1408, %v361
    %v1429 = vmul.f32 %v1417, %v365
    %1430 = vrot.lane.b32.xlu0 %v1082, 111
    %v1431 = vpop.permute.xlu0 %1430
    %1432 = vrot.lane.b32.xlu0 %v1086, 111
    %v1433 = vpop.permute.xlu0 %1432
    %1434 = vrot.lane.b32.xlu0 %v1090, 111
    %v1435 = vpop.permute.xlu0 %1434
    %1436 = vrot.lane.b32.xlu0 %v1083, 111
    %v1437 = vpop.permute.xlu0 %1436
    %1438 = vrot.lane.b32.xlu0 %v1087, 111
    %v1439 = vpop.permute.xlu0 %1438
    %1440 = vrot.lane.b32.xlu0 %v1091, 111
    %v1441 = vpop.permute.xlu0 %1440
    %1442 = vrot.lane.b32.xlu0 %v1084, 111
    %v1443 = vpop.permute.xlu0 %1442
    %1444 = vrot.lane.b32.xlu0 %v1088, 111
    %v1445 = vpop.permute.xlu0 %1444
    %1446 = vrot.lane.b32.xlu0 %v1092, 111
    %v1447 = vpop.permute.xlu0 %1446
    %1448 = vrot.lane.b32.xlu0 %v1085, 111
    %v1449 = vpop.permute.xlu0 %1448
    %1450 = vrot.lane.b32.xlu0 %v1089, 111
    %v1451 = vpop.permute.xlu0 %1450
    %1452 = vrot.lane.b32.xlu0 %v1093, 111
    %v1453 = vpop.permute.xlu0 %1452
    %v1454 = vsel %vm382, %v1443, %v1449
    %v1455 = vsel %vm382, %v1445, %v1451
    %v1456 = vsel %vm382, %v1447, %v1453
    %v1457 = vsel %vm382, %v1437, %v1443
    %v1458 = vsel %vm382, %v1439, %v1445
    %v1459 = vsel %vm382, %v1441, %v1447
    %v1460 = vsel %vm382, %v1431, %v1437
    %v1461 = vsel %vm382, %v1433, %v1439
    %v1462 = vsel %vm382, %v1435, %v1441
    %v1463 = vsel %vm382, %v1449, %v1431
    %v1464 = vsel %vm382, %v1451, %v1433
    %v1465 = vsel %vm382, %v1453, %v1435
    %v1466 = vmul.f32 %v1460, %v393
    %v1467 = vmul.f32 %v1457, %v397
    %v1468 = vmul.f32 %v1454, %v401
    %v1469 = vmul.f32 %v1463, %v405
    %v1470 = vmul.f32 %v1461, %v393
    %v1471 = vmul.f32 %v1458, %v397
    %v1472 = vmul.f32 %v1455, %v401
    %v1473 = vmul.f32 %v1464, %v405
    %v1474 = vmul.f32 %v1462, %v393
    %v1475 = vmul.f32 %v1459, %v397
    %v1476 = vmul.f32 %v1456, %v401
    %v1477 = vmul.f32 %v1465, %v405
    %v1478 = vpack.c.bf16 %v1134, %v1130
    %v1479 = vpack.c.bf16 %v1135, %v1131
    %v1480 = vpack.c.bf16 %v1136, %v1132
    %v1481 = vpack.c.bf16 %v1137, %v1133
    %v1482 = vpack.c.bf16 %v1178, %v1138
    %v1483 = vpack.c.bf16 %v1179, %v1139
    %v1484 = vpack.c.bf16 %v1180, %v1140
    %v1485 = vpack.c.bf16 %v1181, %v1141
    %v1486 = vpack.c.bf16 %v1186, %v1182
    %v1487 = vpack.c.bf16 %v1187, %v1183
    %v1488 = vpack.c.bf16 %v1188, %v1184
    %v1489 = vpack.c.bf16 %v1189, %v1185
    %v1490 = vpack.c.bf16 %v1230, %v1226
    %v1491 = vpack.c.bf16 %v1231, %v1227
    %v1492 = vpack.c.bf16 %v1232, %v1228
    %v1493 = vpack.c.bf16 %v1233, %v1229
    %v1494 = vpack.c.bf16 %v1274, %v1234
    %v1495 = vpack.c.bf16 %v1275, %v1235
    %v1496 = vpack.c.bf16 %v1276, %v1236
    %v1497 = vpack.c.bf16 %v1277, %v1237
    %v1498 = vpack.c.bf16 %v1282, %v1278
    %v1499 = vpack.c.bf16 %v1283, %v1279
    %v1500 = vpack.c.bf16 %v1284, %v1280
    %v1501 = vpack.c.bf16 %v1285, %v1281
    %v1502 = vpack.c.bf16 %v1086, %v1082
    %v1503 = vpack.c.bf16 %v1087, %v1083
    %v1504 = vpack.c.bf16 %v1088, %v1084
    %v1505 = vpack.c.bf16 %v1089, %v1085
    %v1506 = vpack.c.bf16 %v1322, %v1090
    %v1507 = vpack.c.bf16 %v1323, %v1091
    %v1508 = vpack.c.bf16 %v1324, %v1092
    %v1509 = vpack.c.bf16 %v1325, %v1093
    %v1510 = vpack.c.bf16 %v1330, %v1326
    %v1511 = vpack.c.bf16 %v1331, %v1327
    %v1512 = vpack.c.bf16 %v1332, %v1328
    %v1513 = vpack.c.bf16 %v1333, %v1329
    %v1514 = vpack.c.bf16 %v1374, %v1370
    %v1515 = vpack.c.bf16 %v1375, %v1371
    %v1516 = vpack.c.bf16 %v1376, %v1372
    %v1517 = vpack.c.bf16 %v1377, %v1373
    %v1518 = vpack.c.bf16 %v1418, %v1378
    %v1519 = vpack.c.bf16 %v1419, %v1379
    %v1520 = vpack.c.bf16 %v1420, %v1380
    %v1521 = vpack.c.bf16 %v1421, %v1381
    %v1522 = vpack.c.bf16 %v1426, %v1422
    %v1523 = vpack.c.bf16 %v1427, %v1423
    %v1524 = vpack.c.bf16 %v1428, %v1424
    %v1525 = vpack.c.bf16 %v1429, %v1425
    %v1526 = vpack.c.bf16 %v1470, %v1466
    %v1527 = vpack.c.bf16 %v1471, %v1467
    %v1528 = vpack.c.bf16 %v1472, %v1468
    %v1529 = vpack.c.bf16 %v1473, %v1469
    %v1530 = vpack.c.bf16 %v1474, %v1474
    %v1531 = vpack.c.bf16 %v1475, %v1475
    %v1532 = vpack.c.bf16 %v1476, %v1476
    %v1533 = vpack.c.bf16 %v1477, %v1477
    %v1535 = vunpack.c.l.b16 %v998
    %v1536 = vunpack.c.h.b16 %v998
    %v1537 = vpack.c.b16 %v1535, %v1535
    %v1538 = vpack.c.b16 %v1536, %v1536
    %vm1540 = vcmask 719872
    %v1542 = vsel %vm1540, %v1538, 0
    %v1545 = vsel %vm438, %v1530, 0
    %v1548 = vsel %vm438, %v1531, 0
    %v1551 = vsel %vm438, %v1532, 0
    %v1554 = vsel %vm438, %v1533, 0
    %1556 = vmatprep.subr.bf16.mxu0 %v1507
    %1557 = vmatpush1.bf16.msra.mxu0 %v1506
    %1558 = vmatprep.subr.bf16.mxu0 %v1503
    %1559 = vmatpush1.bf16.msra.mxu0 %v1502
    %1560 = vmatprep.subr.bf16.mxu0 %v1499
    %1561 = vmatpush1.bf16.msra.mxu0 %v1498
    %1562 = vmatprep.subr.bf16.mxu0 %v1495
    %1563 = vmatpush1.bf16.msra.mxu0 %v1494
    %1564 = vmatprep.subr.bf16.mxu0 %v1491
    %1565 = vmatpush1.bf16.msra.mxu0 %v1490
    %1566 = vmatprep.subr.bf16.mxu0 %v1487
    %1567 = vmatpush1.bf16.msra.mxu0 %v1486
    %1568 = vmatprep.subr.bf16.mxu0 %v1483
    %1569 = vmatpush1.bf16.msra.mxu0 %v1482
    %1570 = vmatprep.subr.bf16.mxu0 %v1479
    %1571 = vmatpush1.bf16.msra.mxu0 %v1478
    %1572 = vmatprep.subr.bf16.mxu0 0
    %1573 = vmatpush2.bf16.msra.mxu0 0
    %1574 = vmatprep.subr.bf16.mxu0 0
    %1575 = vmatpush2.bf16.msra.mxu0 0
    %1576 = vmatprep.subr.bf16.mxu0 %v1548
    %1577 = vmatpush2.bf16.msra.mxu0 %v1545
    %1578 = vmatprep.subr.bf16.mxu0 %v1527
    %1579 = vmatpush2.bf16.msra.mxu0 %v1526
    %1580 = vmatprep.subr.bf16.mxu0 %v1523
    %1581 = vmatpush2.bf16.msra.mxu0 %v1522
    %1582 = vmatprep.subr.bf16.mxu0 %v1519
    %1583 = vmatpush2.bf16.msra.mxu0 %v1518
    %1584 = vmatprep.subr.bf16.mxu0 %v1515
    %1585 = vmatpush2.bf16.msra.mxu0 %v1514
    %1586 = vmatprep.subr.bf16.mxu0 %v1511
    %1587 = vmatpush2.bf16.msra.mxu0 %v1510
    %1588 = vmatprep.mubr.bf16.mxu0 %v1542
    %1589 = vmatmul.mubr.bf16.gmra.mxu0 %v1537
    %v1590 = vpop.f32.mrf.mxu0
    %v1591 = vadd.f32 0.0, %v1590
    %v1592 = vpop.f32.mrf.mxu0
    %v1593 = vadd.f32 0.0, %v1592
    %v1594 = vpop.f32.mrf.mxu0
    %v1595 = vpop.f32.mrf.mxu0
    %1596 = vdwg.mxu0
    %1597 = vmatprep.subr.bf16.mxu0 %v1509
    %1598 = vmatpush1.bf16.msra.mxu0 %v1508
    %1599 = vmatprep.subr.bf16.mxu0 %v1505
    %1600 = vmatpush1.bf16.msra.mxu0 %v1504
    %1601 = vmatprep.subr.bf16.mxu0 %v1501
    %1602 = vmatpush1.bf16.msra.mxu0 %v1500
    %1603 = vmatprep.subr.bf16.mxu0 %v1497
    %1604 = vmatpush1.bf16.msra.mxu0 %v1496
    %1605 = vmatprep.subr.bf16.mxu0 %v1493
    %1606 = vmatpush1.bf16.msra.mxu0 %v1492
    %1607 = vmatprep.subr.bf16.mxu0 %v1489
    %1608 = vmatpush1.bf16.msra.mxu0 %v1488
    %1609 = vmatprep.subr.bf16.mxu0 %v1485
    %1610 = vmatpush1.bf16.msra.mxu0 %v1484
    %1611 = vmatprep.subr.bf16.mxu0 %v1481
    %1612 = vmatpush1.bf16.msra.mxu0 %v1480
    %1613 = vmatprep.subr.bf16.mxu0 0
    %1614 = vmatpush2.bf16.msra.mxu0 0
    %1615 = vmatprep.subr.bf16.mxu0 0
    %1616 = vmatpush2.bf16.msra.mxu0 0
    %1617 = vmatprep.subr.bf16.mxu0 %v1554
    %1618 = vmatpush2.bf16.msra.mxu0 %v1551
    %1619 = vmatprep.subr.bf16.mxu0 %v1529
    %1620 = vmatpush2.bf16.msra.mxu0 %v1528
    %1621 = vmatprep.subr.bf16.mxu0 %v1525
    %1622 = vmatpush2.bf16.msra.mxu0 %v1524
    %1623 = vmatprep.subr.bf16.mxu0 %v1521
    %1624 = vmatpush2.bf16.msra.mxu0 %v1520
    %1625 = vmatprep.subr.bf16.mxu0 %v1517
    %1626 = vmatpush2.bf16.msra.mxu0 %v1516
    %1627 = vmatprep.subr.bf16.mxu0 %v1513
    %1628 = vmatpush2.bf16.msra.mxu0 %v1512
    %1629 = vmatprep.mubr.bf16.mxu0 %v1542
    %1630 = vmatmul.mubr.bf16.gmra.mxu0 %v1537
    %v1631 = vpop.f32.mrf.mxu0
    %v1632 = vadd.f32 0.0, %v1631
    %v1633 = vpop.f32.mrf.mxu0
    %v1634 = vadd.f32 0.0, %v1633
    %v1635 = vpop.f32.mrf.mxu0
    %v1636 = vpop.f32.mrf.mxu0
    %1637 = vdwg.mxu0
    %1638 = vst [vmem:[#allocation2] sm:$0xff] %v40
    %1639 = vst [vmem:[#allocation2 + $0x8] sm:$0xff] %v41
    %1640 = vst [vmem:[#allocation2 + $0x10] sm:$0xff] %v42
    %1641 = vst [vmem:[#allocation2 + $0x18] sm:$0xff] %v43
    %1642 = vst [vmem:[#allocation2 + $0x20] sm:$0xff] %v486
    %1643 = vst [vmem:[#allocation2 + $0x28] sm:$0xff] %v488
    %1644 = vst [vmem:[#allocation2 + $0x30] sm:$0xff] %v527
    %1645 = vst [vmem:[#allocation2 + $0x38] sm:$0xff] %v529
    %1646 = vst [vmem:[#allocation2 + $0x40] sm:$0xff] %v945
    %1647 = vst [vmem:[#allocation2 + $0x48] sm:$0xff] %v947
    %1648 = vst [vmem:[#allocation2 + $0x50] sm:$0xff] %v986
    %1649 = vst [vmem:[#allocation2 + $0x58] sm:$0xff] %v988
    %1650 = vst [vmem:[#allocation2 + $0x60] sm:$0xff] %v1591
    %1651 = vst [vmem:[#allocation2 + $0x68] sm:$0xff] %v1593
    %1652 = vst [vmem:[#allocation2 + $0x70] sm:$0xff] %v1632
    %1653 = vst [vmem:[#allocation2 + $0x78] sm:$0xff] %v1634
    // Predicated region
    $region46: #{tpu_custom_call.1} parent=1 // pred_check
      _
    $region47: #{tpu_custom_call.1} parent=1 // pred_check_branch
      %1655 = sbr.rel (0) target = $region49
    $region48: #{tpu_custom_call.1} parent=1 // pred_region
      %s1657 = ssub.s32 2048, 2048
      %1658 = vsyncadd [#allocation3], %s1657
      %s1659 = sshll.u32 [#allocation2], 4
      %s1660 = int_to_ptr.vmem [resolvable:$true] %s1659
      %1665 = dma.vmem_to_hbm [thread:$0]  %s1660, 2048, %s11, [#allocation3], 512, 512, 32
    $region49: #{tpu_custom_call.1} parent=1 // pred_fallthru
      _
    // Predicated region
    $region50: #{tpu_custom_call.1} parent=1 // pred_check
      _
    $region51: #{tpu_custom_call.1} parent=1 // pred_check_branch
      %1667 = sbr.rel (0) target = $region53
    $region52: #{tpu_custom_call.1} parent=1 // pred_region
      %1668 = dma.done [#allocation3], 2048
    $region53: #{tpu_custom_call.1} parent=1 // pred_fallthru
      _
    %1669 = vsyncpa [#allocation3], 1

</llo_original>
